<compile_context>
chip_gen: v7x
topology: tpu7x:2x2x1
jax: 0.10.0
libtpu: 0.0.40
codegen_flags: <defaults>
</compile_context>

<pallas_src>
import functools
import warnings

import jax
import jax.numpy as jnp
from jax.experimental import pallas as pl
from jax.experimental.pallas import tpu as pltpu

# Donation is best-effort: on the padded-HW path a donated buffer can't be aliased
# and XLA falls back to a copy (correct, just slower) with a warning; keep logs clean.
warnings.filterwarnings("ignore", message="Some donated buffers were not usable")

_VMEM_LIMIT_BYTES = 32 * 1024 * 1024   # safe on v5e / v6e / v7x (v7x: 64 MiB physical)
_ACT_VMEM_BUDGET = 24 * 1024 * 1024    # budget for double-buffered activation tiles


def _pick_token_tile(hw_pad, *, batch, fold_num, channels, itemsize, cap=1024):
    """Token-tile size: a multiple of 128 dividing hw_pad, VMEM-clamped, <= cap."""
    cands = [t for t in range(128, hw_pad + 1, 128) if hw_pad % t == 0]

    def vmem_ok(t):
        n_out = max(1, fold_num - 1)
        c_pad = -(-channels // 8) * 8
        # 2x for double-buffering; weights / hidden scratch are comparatively tiny.
        return 2 * (fold_num + n_out) * c_pad * t * itemsize <= _ACT_VMEM_BUDGET

    ok = [t for t in cands if t <= cap and vmem_ok(t)] or cands[:1]
    tn = max(ok)
    # v7x megacore: with batch == 1 keep >= 2 grid steps along the token axis so both
    # TensorCores get work (no effect on single-TC v5e / v6e).
    if batch == 1 and tn == hw_pad and hw_pad >= 256:
        half = [t for t in ok if t <= hw_pad // 2]
        if half:
            tn = max(half)
    return tn


def _make_fold_kernel(fold_num, channels):
    """refs = (x_0..x_{F-1}, W1t, b1, W2t, b2, out_0..out_{n_out-1}).

    x_i / out_i block: (1, C, tn) -- tokens on the 128-lane axis.
    W1t: (U, Hd, C), b1: (U, Hd, 1), W2t: (U, C, Hd), b2: (U, C, 1), all f32."""
    vpu_first_matmul = channels <= 8   # a K=C matmul would leave the MXU ~empty

    def kernel(*refs):
        x_refs = refs[:fold_num]
        w1t_ref, b1_ref, w2t_ref, b2_ref = refs[fold_num:fold_num + 4]
        out_refs = refs[fold_num + 4:]

        def unit(i, x):                        # x: (C, tn) f32
            if vpu_first_matmul:
                w1 = w1t_ref[i]                # (Hd, C)
                h = b1_ref[i]                  # (Hd, 1) -> broadcasts to (Hd, tn)
                for c in range(channels):      # static unroll: C VPU broadcast-FMAs
                    h = h + w1[:, c:c + 1] * x[c:c + 1, :]
            else:
                h = jnp.dot(w1t_ref[i], x,
                            preferred_element_type=jnp.float32,
                            precision=jax.lax.Precision.HIGHEST) + b1_ref[i]
            g = jax.nn.gelu(h, approximate=True)           # tanh GELU on the EUP
            y = jnp.dot(w2t_ref[i], g,
                        preferred_element_type=jnp.float32,
                        precision=jax.lax.Precision.HIGHEST)
            return y + b2_ref[i]

        cur = x_refs[0][0].astype(jnp.float32)
        if fold_num == 1:
            out_refs[0][0] = (cur + unit(0, cur)).astype(out_refs[0].dtype)
            return
        for i in range(fold_num - 1):          # static unroll over folds
            cur = x_refs[i + 1][0].astype(jnp.float32) + unit(i, cur)
            out_refs[i][0] = cur.astype(out_refs[i].dtype)

    return kernel


def _fused_fold_call(x_flat, w1t, b1, w2t, b2, *, fold_num, tn):
    """x_flat: list of fold_num arrays (B, C, HW_pad).  Returns tuple of updated xs."""
    B, C, HW = x_flat[0].shape
    U, Hd, _ = w1t.shape
    n_out = max(1, fold_num - 1)
    grid = (B, HW // tn)

    tile_spec = pl.BlockSpec((1, C, tn), lambda b, t: (b, 0, t))
    const = lambda b, t: (0, 0, 0)             # grid-invariant -> fetched once
    in_specs = (
        [tile_spec] * fold_num
        + [
            pl.BlockSpec((U, Hd, C), const),   # W1^T
            pl.BlockSpec((U, Hd, 1), const),   # b1
            pl.BlockSpec((U, C, Hd), const),   # W2^T
            pl.BlockSpec((U, C, 1), const),    # b2
        ]
    )
    out_specs = tuple(tile_spec for _ in range(n_out))
    out_shape = tuple(
        jax.ShapeDtypeStruct((B, C, HW), x_flat[0].dtype) for _ in range(n_out)
    )

    # In-place residual update: the xs[i+1] buffer becomes output i.
    aliases = {0: 0} if fold_num == 1 else {i + 1: i for i in range(fold_num - 1)}

    return pl.pallas_call(
        _make_fold_kernel(fold_num, C),
        out_shape=out_shape,
        grid_spec=pltpu.PrefetchScalarGridSpec(
            num_scalar_prefetch=0,
            grid=grid,
            in_specs=in_specs,
            out_specs=out_specs,
        ),
        compiler_params=pltpu.CompilerParams(
            dimension_semantics=("parallel", "parallel"),
            vmem_limit_bytes=_VMEM_LIMIT_BYTES,
        ),
        input_output_aliases=aliases,
    )(*x_flat, w1t, b1, w2t, b2)


def _pack_unit_params(unit_params):
    """Stack per-unit (W1, b1, W2, b2) into transposed f32 tensors (runs inside jit)."""
    w1t = jnp.stack([w1.T for (w1, _, _, _) in unit_params]).astype(jnp.float32)
    b1 = jnp.stack([b.reshape(-1, 1) for (_, b, _, _) in unit_params]).astype(jnp.float32)
    w2t = jnp.stack([w2.T for (_, _, w2, _) in unit_params]).astype(jnp.float32)
    b2 = jnp.stack([b.reshape(-1, 1) for (_, _, _, b) in unit_params]).astype(jnp.float32)
    return w1t, b1, w2t, b2


def _flatten_pad(x, hw_pad):
    B, C, H, W = x.shape
    xf = x.reshape(B, C, H * W)                # free reshape: tokens on the lane axis
    if hw_pad != H * W:
        xf = jnp.pad(xf, ((0, 0), (0, 0), (0, hw_pad - H * W)))
    return xf


def _unflatten_crop(o, shape):
    B, C, H, W = shape
    return o[:, :, : H * W].reshape(B, C, H, W)


@functools.partial(jax.jit, static_argnames=("fold_num", "tn", "hw_pad"),
                   donate_argnums=(1,))
def _fold_forward_multi(x0, xs_rest, unit_params, *, fold_num, tn, hw_pad):
    packed = _pack_unit_params(unit_params)
    shape = x0.shape
    x_flat = [_flatten_pad(x, hw_pad) for x in (x0,) + tuple(xs_rest)]
    outs = _fused_fold_call(x_flat, *packed, fold_num=fold_num, tn=tn)
    outs = [_unflatten_crop(o, shape) for o in outs]
    # PyTorch: xs -> [x0, x1', ..., x_{F-1}'] then xs.reverse().
    return list(reversed(outs)) + [x0]


@functools.partial(jax.jit, static_argnames=("tn", "hw_pad"), donate_argnums=(0,))
def _fold_forward_single(x0, unit_params, *, tn, hw_pad):
    packed = _pack_unit_params(unit_params)
    shape = x0.shape
    outs = _fused_fold_call([_flatten_pad(x0, hw_pad)], *packed, fold_num=1, tn=tn)
    return [_unflatten_crop(outs[0], shape)]


def fold_block_forward(xs, unit_params, fold_num=None, *, token_tile_cap=1024):
    """Exact FoldBlock.forward semantics (list of fold_num NCHW arrays in/out).

    NOTE: xs[1:] (or xs[0] when fold_num == 1) are donated / updated in place —
    do not reuse those arrays after the call."""
    xs = list(xs)
    if fold_num is None:
        fold_num = len(xs)
    assert len(xs) == fold_num
    assert len(unit_params) == max(1, fold_num - 1)
    B, C, H, W = xs[0].shape
    hw_pad = -(-(H * W) // 128) * 128          # lane-dense (unmasked) stores
    tn = _pick_token_tile(hw_pad, batch=B, fold_num=fold_num, channels=C,
                          itemsize=jnp.dtype(xs[0].dtype).itemsize,
                          cap=token_tile_cap)
    if fold_num == 1:
        return _fold_forward_single(xs[0], tuple(unit_params), tn=tn, hw_pad=hw_pad)
    return _fold_forward_multi(xs[0], tuple(xs[1:]), tuple(unit_params),
                               fold_num=fold_num, tn=tn, hw_pad=hw_pad)


def init_unit_params(key, channels, hidden, dtype=jnp.float32):
    k1, k2, k3, k4 = jax.random.split(key, 4)
    w1 = jax.random.normal(k1, (channels, hidden), dtype) * 0.05
    b1 = jax.random.normal(k2, (hidden,), dtype) * 0.05
    w2 = jax.random.normal(k3, (hidden, channels), dtype) * 0.05
    b2 = jax.random.normal(k4, (channels,), dtype) * 0.05
    return (w1, b1, w2, b2)


def _reference_fold(xs, unit_params, fold_num):
    """Pure-JAX reference matching the PyTorch module."""

    def unit(p, x):
        w1, b1, w2, b2 = p
        B, C, H, W = x.shape
        t = jnp.transpose(x, (0, 2, 3, 1)).reshape(-1, C)
        h = jax.nn.gelu(
            jnp.dot(t, w1, precision=jax.lax.Precision.HIGHEST) + b1,
            approximate=True,
        )
        y = jnp.dot(h, w2, precision=jax.lax.Precision.HIGHEST) + b2
        return jnp.transpose(y.reshape(B, H, W, C), (0, 3, 1, 2))

    xs = list(xs)
    if fold_num == 1:
        xs[0] = xs[0] + unit(unit_params[0], xs[0])
        return xs
    for i in range(fold_num - 1):
        xs[i + 1] = xs[i + 1] + unit(unit_params[i], xs[i])
    xs.reverse()
    return xs


if __name__ == "__main__":
    B, C, H, W = 2, 4, 16, 16   # NCHW, as PyTorch would feed the 1x1 convs
    hidden = 32
    fold_num = 3

    key = jax.random.PRNGKey(0)
    kx, kp = jax.random.split(key)
    x_keys = jax.random.split(kx, fold_num)
    p_keys = jax.random.split(kp, max(1, fold_num - 1))

    xs = [jax.random.normal(k, (B, C, H, W), jnp.float32) for k in x_keys]
    unit_params = [init_unit_params(k, C, hidden) for k in p_keys]

    # Compute references BEFORE the kernel calls: the kernel donates xs[1:]
    # (and xs[0] on the fold_num == 1 path).
    refs = _reference_fold(xs, unit_params, fold_num)
    refs1 = _reference_fold(xs[:1], unit_params[:1], 1)

    # fold_num = 3 path
    outs = fold_block_forward(xs, unit_params, fold_num)
    outs = [jax.block_until_ready(o) for o in outs]
    assert len(outs) == fold_num
    for o, r in zip(outs, refs):
        assert o.shape == (B, C, H, W)
        assert bool(jnp.all(jnp.isfinite(o)))
        assert bool(jnp.allclose(o, r, rtol=2e-3, atol=2e-3)), float(
            jnp.max(jnp.abs(o - r))
        )

    # fold_num = 1 path (single unit, self-residual; donates xs[0])
    outs1 = fold_block_forward(xs[:1], unit_params[:1], 1)
    outs1 = [jax.block_until_ready(o) for o in outs1]
    assert len(outs1) == 1
    assert bool(jnp.allclose(outs1[0], refs1[0], rtol=2e-3, atol=2e-3))

    # bf16 activation I/O path (halves HBM traffic; kernel still computes in f32).
    xb = [jax.random.normal(k, (B, C, H, W), jnp.float32).astype(jnp.bfloat16)
          for k in x_keys]
    refs_b = _reference_fold([x.astype(jnp.float32) for x in xb], unit_params, fold_num)
    outs_b = fold_block_forward(xb, unit_params, fold_num)
    outs_b = [jax.block_until_ready(o) for o in outs_b]
    for o, r in zip(outs_b, refs_b):
        assert o.dtype == jnp.bfloat16
        assert bool(jnp.allclose(o.astype(jnp.float32), r, rtol=3e-2, atol=3e-2))

    print("KERNEL_OK")
</pallas_src>

<mosaic_0001>
module attributes {stable_mosaic.version = 11 : i64} {
  func.func @kernel(%arg0: i32, %arg1: i32, %arg2: memref<1x4x256xf32, #tpu.memory_space<vmem>>, %arg3: memref<1x4x256xf32, #tpu.memory_space<vmem>>, %arg4: memref<1x4x256xf32, #tpu.memory_space<vmem>>, %arg5: memref<2x32x4xf32, #tpu.memory_space<vmem>>, %arg6: memref<2x32x1xf32, #tpu.memory_space<vmem>>, %arg7: memref<2x4x32xf32, #tpu.memory_space<vmem>>, %arg8: memref<2x4x1xf32, #tpu.memory_space<vmem>>, %arg9: memref<1x4x256xf32, #tpu.memory_space<vmem>>, %arg10: memref<1x4x256xf32, #tpu.memory_space<vmem>>) attributes {dimension_semantics = [#tpu.dimension_semantics<parallel>, #tpu.dimension_semantics<parallel>], iteration_bounds = array<i64: 2, 1>, scalar_prefetch = 0 : i64, scratch_operands = 0 : i64, tpu.core_type = #tpu.core_type<tc>, window_params = [{transform_indices = @transform_0, window_bounds = array<i64: 1, 4, 256>}, {transform_indices = @transform_1, window_bounds = array<i64: 1, 4, 256>}, {transform_indices = @transform_2, window_bounds = array<i64: 1, 4, 256>}, {pipeline_mode = #tpu.pipeline_mode<synchronous>, transform_indices = @transform_3, window_bounds = array<i64: 2, 32, 4>}, {pipeline_mode = #tpu.pipeline_mode<synchronous>, transform_indices = @transform_4, window_bounds = array<i64: 2, 32, 1>}, {pipeline_mode = #tpu.pipeline_mode<synchronous>, transform_indices = @transform_5, window_bounds = array<i64: 2, 4, 32>}, {pipeline_mode = #tpu.pipeline_mode<synchronous>, transform_indices = @transform_6, window_bounds = array<i64: 2, 4, 1>}, {transform_indices = @transform_7, window_bounds = array<i64: 1, 4, 256>}, {transform_indices = @transform_8, window_bounds = array<i64: 1, 4, 256>}]} {
    %c0 = arith.constant 0 : index
    %c0_0 = arith.constant 0 : index
    %c0_1 = arith.constant 0 : index
    %0 = vector.load %arg2[%c0, %c0_0, %c0_1] : memref<1x4x256xf32, #tpu.memory_space<vmem>>, vector<1x4x256xf32>
    %1 = vector.shape_cast %0 : vector<1x4x256xf32> to vector<4x256xf32>
    %c0_2 = arith.constant 0 : index
    %c0_3 = arith.constant 0 : index
    %c0_4 = arith.constant 0 : index
    %2 = vector.load %arg3[%c0_2, %c0_3, %c0_4] : memref<1x4x256xf32, #tpu.memory_space<vmem>>, vector<1x4x256xf32>
    %3 = vector.shape_cast %2 : vector<1x4x256xf32> to vector<4x256xf32>
    %c0_5 = arith.constant 0 : index
    %c0_6 = arith.constant 0 : index
    %c0_7 = arith.constant 0 : index
    %4 = vector.load %arg5[%c0_5, %c0_6, %c0_7] : memref<2x32x4xf32, #tpu.memory_space<vmem>>, vector<1x32x4xf32>
    %5 = vector.shape_cast %4 : vector<1x32x4xf32> to vector<32x4xf32>
    %c0_8 = arith.constant 0 : index
    %c0_9 = arith.constant 0 : index
    %c0_10 = arith.constant 0 : index
    %6 = vector.load %arg6[%c0_8, %c0_9, %c0_10] : memref<2x32x1xf32, #tpu.memory_space<vmem>>, vector<1x32x1xf32>
    %7 = vector.shape_cast %6 : vector<1x32x1xf32> to vector<32x1xf32>
    %8 = vector.extract_strided_slice %5 {offsets = [0, 0], sizes = [32, 1], strides = [1, 1]} : vector<32x4xf32> to vector<32x1xf32>
    %9 = vector.extract_strided_slice %1 {offsets = [0, 0], sizes = [1, 256], strides = [1, 1]} : vector<4x256xf32> to vector<1x256xf32>
    %10 = vector.broadcast %8 : vector<32x1xf32> to vector<32x256xf32>
    %11 = vector.broadcast %9 : vector<1x256xf32> to vector<32x256xf32>
    %12 = arith.mulf %10, %11 : vector<32x256xf32>
    %13 = vector.broadcast %7 : vector<32x1xf32> to vector<32x256xf32>
    %14 = arith.addf %13, %12 : vector<32x256xf32>
    %15 = vector.extract_strided_slice %5 {offsets = [0, 1], sizes = [32, 1], strides = [1, 1]} : vector<32x4xf32> to vector<32x1xf32>
    %16 = vector.extract_strided_slice %1 {offsets = [1, 0], sizes = [1, 256], strides = [1, 1]} : vector<4x256xf32> to vector<1x256xf32>
    %17 = vector.broadcast %15 : vector<32x1xf32> to vector<32x256xf32>
    %18 = vector.broadcast %16 : vector<1x256xf32> to vector<32x256xf32>
    %19 = arith.mulf %17, %18 : vector<32x256xf32>
    %20 = arith.addf %14, %19 : vector<32x256xf32>
    %21 = vector.extract_strided_slice %5 {offsets = [0, 2], sizes = [32, 1], strides = [1, 1]} : vector<32x4xf32> to vector<32x1xf32>
    %22 = vector.extract_strided_slice %1 {offsets = [2, 0], sizes = [1, 256], strides = [1, 1]} : vector<4x256xf32> to vector<1x256xf32>
    %23 = vector.broadcast %21 : vector<32x1xf32> to vector<32x256xf32>
    %24 = vector.broadcast %22 : vector<1x256xf32> to vector<32x256xf32>
    %25 = arith.mulf %23, %24 : vector<32x256xf32>
    %26 = arith.addf %20, %25 : vector<32x256xf32>
    %27 = vector.extract_strided_slice %5 {offsets = [0, 3], sizes = [32, 1], strides = [1, 1]} : vector<32x4xf32> to vector<32x1xf32>
    %28 = vector.extract_strided_slice %1 {offsets = [3, 0], sizes = [1, 256], strides = [1, 1]} : vector<4x256xf32> to vector<1x256xf32>
    %29 = vector.broadcast %27 : vector<32x1xf32> to vector<32x256xf32>
    %30 = vector.broadcast %28 : vector<1x256xf32> to vector<32x256xf32>
    %31 = arith.mulf %29, %30 : vector<32x256xf32>
    %32 = arith.addf %26, %31 : vector<32x256xf32>
    %33 = arith.mulf %32, %32 : vector<32x256xf32>
    %34 = arith.mulf %32, %33 : vector<32x256xf32>
    %cst = arith.constant 4.471500e-02 : f32
    %35 = vector.broadcast %cst : f32 to vector<32x256xf32>
    %36 = arith.mulf %35, %34 : vector<32x256xf32>
    %37 = arith.addf %32, %36 : vector<32x256xf32>
    %cst_11 = arith.constant 0.797884583 : f32
    %38 = vector.broadcast %cst_11 : f32 to vector<32x256xf32>
    %39 = arith.mulf %38, %37 : vector<32x256xf32>
    %40 = math.tanh %39 : vector<32x256xf32>
    %cst_12 = arith.constant 1.000000e+00 : f32
    %41 = vector.broadcast %cst_12 : f32 to vector<32x256xf32>
    %42 = arith.addf %41, %40 : vector<32x256xf32>
    %cst_13 = arith.constant 5.000000e-01 : f32
    %43 = vector.broadcast %cst_13 : f32 to vector<32x256xf32>
    %44 = arith.mulf %43, %42 : vector<32x256xf32>
    %45 = arith.mulf %32, %44 : vector<32x256xf32>
    %c0_14 = arith.constant 0 : index
    %c0_15 = arith.constant 0 : index
    %c0_16 = arith.constant 0 : index
    %46 = vector.load %arg7[%c0_14, %c0_15, %c0_16] : memref<2x4x32xf32, #tpu.memory_space<vmem>>, vector<1x4x32xf32>
    %47 = vector.shape_cast %46 : vector<1x4x32xf32> to vector<4x32xf32>
    %cst_17 = arith.constant dense<0.000000e+00> : vector<4x256xf32>
    %48 = tpu.matmul %47, %45, %cst_17 {dimension_numbers = #tpu.dot_dimension_numbers<[1], [0], [0], [1], [0, 0, 1, 1], [], []>, precision = #tpu.contract_precision<fp32>} : vector<4x32xf32>, vector<32x256xf32>, vector<4x256xf32> -> vector<4x256xf32>
    %c0_18 = arith.constant 0 : index
    %c0_19 = arith.constant 0 : index
    %c0_20 = arith.constant 0 : index
    %49 = vector.load %arg8[%c0_18, %c0_19, %c0_20] : memref<2x4x1xf32, #tpu.memory_space<vmem>>, vector<1x4x1xf32>
    %50 = vector.shape_cast %49 : vector<1x4x1xf32> to vector<4x1xf32>
    %51 = vector.broadcast %50 : vector<4x1xf32> to vector<4x256xf32>
    %52 = arith.addf %48, %51 : vector<4x256xf32>
    %53 = arith.addf %3, %52 : vector<4x256xf32>
    %c0_21 = arith.constant 0 : index
    %c0_22 = arith.constant 0 : index
    %c0_23 = arith.constant 0 : index
    %54 = vector.load %arg9[%c0_21, %c0_22, %c0_23] : memref<1x4x256xf32, #tpu.memory_space<vmem>>, vector<1x4x256xf32>
    %55 = vector.shape_cast %54 : vector<1x4x256xf32> to vector<4x256xf32>
    %56 = vector.shape_cast %53 : vector<4x256xf32> to vector<1x4x256xf32>
    tpu.vector_store %arg9[%c0_21, %c0_22, %c0_23], %56 {strides = array<i32>} : memref<1x4x256xf32, #tpu.memory_space<vmem>>, vector<1x4x256xf32>,
    %c0_24 = arith.constant 0 : index
    %c0_25 = arith.constant 0 : index
    %c0_26 = arith.constant 0 : index
    %57 = vector.load %arg4[%c0_24, %c0_25, %c0_26] : memref<1x4x256xf32, #tpu.memory_space<vmem>>, vector<1x4x256xf32>
    %58 = vector.shape_cast %57 : vector<1x4x256xf32> to vector<4x256xf32>
    %c1 = arith.constant 1 : index
    %c0_27 = arith.constant 0 : index
    %c0_28 = arith.constant 0 : index
    %59 = vector.load %arg5[%c1, %c0_27, %c0_28] : memref<2x32x4xf32, #tpu.memory_space<vmem>>, vector<1x32x4xf32>
    %60 = vector.shape_cast %59 : vector<1x32x4xf32> to vector<32x4xf32>
    %c1_29 = arith.constant 1 : index
    %c0_30 = arith.constant 0 : index
    %c0_31 = arith.constant 0 : index
    %61 = vector.load %arg6[%c1_29, %c0_30, %c0_31] : memref<2x32x1xf32, #tpu.memory_space<vmem>>, vector<1x32x1xf32>
    %62 = vector.shape_cast %61 : vector<1x32x1xf32> to vector<32x1xf32>
    %63 = vector.extract_strided_slice %60 {offsets = [0, 0], sizes = [32, 1], strides = [1, 1]} : vector<32x4xf32> to vector<32x1xf32>
    %64 = vector.extract_strided_slice %53 {offsets = [0, 0], sizes = [1, 256], strides = [1, 1]} : vector<4x256xf32> to vector<1x256xf32>
    %65 = vector.broadcast %63 : vector<32x1xf32> to vector<32x256xf32>
    %66 = vector.broadcast %64 : vector<1x256xf32> to vector<32x256xf32>
    %67 = arith.mulf %65, %66 : vector<32x256xf32>
    %68 = vector.broadcast %62 : vector<32x1xf32> to vector<32x256xf32>
    %69 = arith.addf %68, %67 : vector<32x256xf32>
    %70 = vector.extract_strided_slice %60 {offsets = [0, 1], sizes = [32, 1], strides = [1, 1]} : vector<32x4xf32> to vector<32x1xf32>
    %71 = vector.extract_strided_slice %53 {offsets = [1, 0], sizes = [1, 256], strides = [1, 1]} : vector<4x256xf32> to vector<1x256xf32>
    %72 = vector.broadcast %70 : vector<32x1xf32> to vector<32x256xf32>
    %73 = vector.broadcast %71 : vector<1x256xf32> to vector<32x256xf32>
    %74 = arith.mulf %72, %73 : vector<32x256xf32>
    %75 = arith.addf %69, %74 : vector<32x256xf32>
    %76 = vector.extract_strided_slice %60 {offsets = [0, 2], sizes = [32, 1], strides = [1, 1]} : vector<32x4xf32> to vector<32x1xf32>
    %77 = vector.extract_strided_slice %53 {offsets = [2, 0], sizes = [1, 256], strides = [1, 1]} : vector<4x256xf32> to vector<1x256xf32>
    %78 = vector.broadcast %76 : vector<32x1xf32> to vector<32x256xf32>
    %79 = vector.broadcast %77 : vector<1x256xf32> to vector<32x256xf32>
    %80 = arith.mulf %78, %79 : vector<32x256xf32>
    %81 = arith.addf %75, %80 : vector<32x256xf32>
    %82 = vector.extract_strided_slice %60 {offsets = [0, 3], sizes = [32, 1], strides = [1, 1]} : vector<32x4xf32> to vector<32x1xf32>
    %83 = vector.extract_strided_slice %53 {offsets = [3, 0], sizes = [1, 256], strides = [1, 1]} : vector<4x256xf32> to vector<1x256xf32>
    %84 = vector.broadcast %82 : vector<32x1xf32> to vector<32x256xf32>
    %85 = vector.broadcast %83 : vector<1x256xf32> to vector<32x256xf32>
    %86 = arith.mulf %84, %85 : vector<32x256xf32>
    %87 = arith.addf %81, %86 : vector<32x256xf32>
    %88 = arith.mulf %87, %87 : vector<32x256xf32>
    %89 = arith.mulf %87, %88 : vector<32x256xf32>
    %cst_32 = arith.constant 4.471500e-02 : f32
    %90 = vector.broadcast %cst_32 : f32 to vector<32x256xf32>
    %91 = arith.mulf %90, %89 : vector<32x256xf32>
    %92 = arith.addf %87, %91 : vector<32x256xf32>
    %cst_33 = arith.constant 0.797884583 : f32
    %93 = vector.broadcast %cst_33 : f32 to vector<32x256xf32>
    %94 = arith.mulf %93, %92 : vector<32x256xf32>
    %95 = math.tanh %94 : vector<32x256xf32>
    %cst_34 = arith.constant 1.000000e+00 : f32
    %96 = vector.broadcast %cst_34 : f32 to vector<32x256xf32>
    %97 = arith.addf %96, %95 : vector<32x256xf32>
    %cst_35 = arith.constant 5.000000e-01 : f32
    %98 = vector.broadcast %cst_35 : f32 to vector<32x256xf32>
    %99 = arith.mulf %98, %97 : vector<32x256xf32>
    %100 = arith.mulf %87, %99 : vector<32x256xf32>
    %c1_36 = arith.constant 1 : index
    %c0_37 = arith.constant 0 : index
    %c0_38 = arith.constant 0 : index
    %101 = vector.load %arg7[%c1_36, %c0_37, %c0_38] : memref<2x4x32xf32, #tpu.memory_space<vmem>>, vector<1x4x32xf32>
    %102 = vector.shape_cast %101 : vector<1x4x32xf32> to vector<4x32xf32>
    %cst_39 = arith.constant dense<0.000000e+00> : vector<4x256xf32>
    %103 = tpu.matmul %102, %100, %cst_39 {dimension_numbers = #tpu.dot_dimension_numbers<[1], [0], [0], [1], [0, 0, 1, 1], [], []>, precision = #tpu.contract_precision<fp32>} : vector<4x32xf32>, vector<32x256xf32>, vector<4x256xf32> -> vector<4x256xf32>
    %c1_40 = arith.constant 1 : index
    %c0_41 = arith.constant 0 : index
    %c0_42 = arith.constant 0 : index
    %104 = vector.load %arg8[%c1_40, %c0_41, %c0_42] : memref<2x4x1xf32, #tpu.memory_space<vmem>>, vector<1x4x1xf32>
    %105 = vector.shape_cast %104 : vector<1x4x1xf32> to vector<4x1xf32>
    %106 = vector.broadcast %105 : vector<4x1xf32> to vector<4x256xf32>
    %107 = arith.addf %103, %106 : vector<4x256xf32>
    %108 = arith.addf %58, %107 : vector<4x256xf32>
    %c0_43 = arith.constant 0 : index
    %c0_44 = arith.constant 0 : index
    %c0_45 = arith.constant 0 : index
    %109 = vector.load %arg10[%c0_43, %c0_44, %c0_45] : memref<1x4x256xf32, #tpu.memory_space<vmem>>, vector<1x4x256xf32>
    %110 = vector.shape_cast %109 : vector<1x4x256xf32> to vector<4x256xf32>
    %111 = vector.shape_cast %108 : vector<4x256xf32> to vector<1x4x256xf32>
    tpu.vector_store %arg10[%c0_43, %c0_44, %c0_45], %111 {strides = array<i32>} : memref<1x4x256xf32, #tpu.memory_space<vmem>>, vector<1x4x256xf32>,
    return
  }
  func.func @transform_0(%arg0: i32, %arg1: i32) -> (i32, i32, i32) {
    %c0_i32 = arith.constant 0 : i32
    %c0_i32_0 = arith.constant 0 : i32
    return %arg0, %c0_i32, %arg1 : i32, i32, i32
  }
  func.func @transform_1(%arg0: i32, %arg1: i32) -> (i32, i32, i32) {
    %c0_i32 = arith.constant 0 : i32
    %c0_i32_0 = arith.constant 0 : i32
    return %arg0, %c0_i32, %arg1 : i32, i32, i32
  }
  func.func @transform_2(%arg0: i32, %arg1: i32) -> (i32, i32, i32) {
    %c0_i32 = arith.constant 0 : i32
    %c0_i32_0 = arith.constant 0 : i32
    return %arg0, %c0_i32, %arg1 : i32, i32, i32
  }
  func.func @transform_3(%arg0: i32, %arg1: i32) -> (i32, i32, i32) {
    %c0_i32 = arith.constant 0 : i32
    %c0_i32_0 = arith.constant 0 : i32
    %c0_i32_1 = arith.constant 0 : i32
    %c0_i32_2 = arith.constant 0 : i32
    return %c0_i32, %c0_i32_0, %c0_i32_1 : i32, i32, i32
  }
  func.func @transform_4(%arg0: i32, %arg1: i32) -> (i32, i32, i32) {
    %c0_i32 = arith.constant 0 : i32
    %c0_i32_0 = arith.constant 0 : i32
    %c0_i32_1 = arith.constant 0 : i32
    %c0_i32_2 = arith.constant 0 : i32
    return %c0_i32, %c0_i32_0, %c0_i32_1 : i32, i32, i32
  }
  func.func @transform_5(%arg0: i32, %arg1: i32) -> (i32, i32, i32) {
    %c0_i32 = arith.constant 0 : i32
    %c0_i32_0 = arith.constant 0 : i32
    %c0_i32_1 = arith.constant 0 : i32
    %c0_i32_2 = arith.constant 0 : i32
    return %c0_i32, %c0_i32_0, %c0_i32_1 : i32, i32, i32
  }
  func.func @transform_6(%arg0: i32, %arg1: i32) -> (i32, i32, i32) {
    %c0_i32 = arith.constant 0 : i32
    %c0_i32_0 = arith.constant 0 : i32
    %c0_i32_1 = arith.constant 0 : i32
    %c0_i32_2 = arith.constant 0 : i32
    return %c0_i32, %c0_i32_0, %c0_i32_1 : i32, i32, i32
  }
  func.func @transform_7(%arg0: i32, %arg1: i32) -> (i32, i32, i32) {
    %c0_i32 = arith.constant 0 : i32
    %c0_i32_0 = arith.constant 0 : i32
    return %arg0, %c0_i32, %arg1 : i32, i32, i32
  }
  func.func @transform_8(%arg0: i32, %arg1: i32) -> (i32, i32, i32) {
    %c0_i32 = arith.constant 0 : i32
    %c0_i32_0 = arith.constant 0 : i32
    return %arg0, %c0_i32, %arg1 : i32, i32, i32
  }
}

</mosaic_0001>

<llo_original>
// kernel: _fold_forward_multi.1
$region0: #{_fold_forward_multi.1}
  #allocation0 [shape = 'u32[]', space=smem, size = 0x4, offset = 0x4, fixed_abs, tag = 'smem constant byte address 0x4 - core index']
  #allocation1 [shape = 'u32[144,128]{1,0:T(1,128)}', space=vmem, size = 0x12000, scoped, tag = 'internal scratch']
  %s0 = inlined_call_operand.vmem [shape: f32[2,4,256], index: 0, kind: input, shape index: {}]
  %s1 = inlined_call_operand.vmem [shape: f32[2,4,256], index: 1, kind: input, shape index: {}, may-alias: {1,7}]
  %s2 = inlined_call_operand.vmem [shape: f32[2,4,256], index: 2, kind: input, shape index: {}, may-alias: {2,8}]
  %s3 = inlined_call_operand.vmem [shape: f32[2,32,4], index: 3, kind: input, shape index: {}]
  %s4 = inlined_call_operand.vmem [shape: f32[2,32,1], index: 4, kind: input, shape index: {}]
  %s5 = inlined_call_operand.vmem [shape: f32[2,4,32], index: 5, kind: input, shape index: {}]
  %s6 = inlined_call_operand.vmem [shape: f32[2,4,1], index: 6, kind: input, shape index: {}]
  %s7 = inlined_call_operand.vmem [shape: f32[2,4,256], index: 7, kind: output, shape index: {0}, may-alias: {1,7}]
  %s8 = inlined_call_operand.vmem [shape: f32[2,4,256], index: 8, kind: output, shape index: {1}, may-alias: {2,8}]
  %9 = xla_tuple %s7, %s8
  %s10 = sld [smem:[#allocation0]]
  $region69: #{_fold_forward_multi.1} parent=0
    _
  %s12 = ssub.s32 1, %s10
  %s13 = scalar_select 0, %s12, %s10
  loop: start=0, step=1, limit=4
  $region2: #{_fold_forward_multi.1} parent=0 // loop_pre_header
    _
  $region3: #{_fold_forward_multi.1} parent=0 // loop_header
    %s15 = sphi 0, %s19
    %p16 = scmp.ge.s32.totalorder %s15, 4
    %s22 = sphi 0, %s34
    %s23 = sphi 0, %s30
    %s24 = sphi 0, %s22
    %s25 = sphi 0, %s23
    %s26 = sphi 0, %s24
    %s27 = sphi 0, %s25
    %s39 = sphi 0, %s41
    %s42 = sphi 0, %s39
    %s43 = sphi 0, %s42
    %s59 = sphi 0, %s43
    %s67 = sphi 0, %s69
    %s70 = sphi 0, %s67
    %s71 = sphi 0, %s70
    %s87 = sphi 0, %s71
    %s95 = sphi 0, %s97
    %s98 = sphi 0, %s95
    %s99 = sphi 0, %s98
    %s115 = sphi 0, %s99
    %s119 = sphi 0, %s119
    %s121 = sphi 0, %s119
    %s122 = sphi 0, %s121
    %s136 = sphi 0, %s122
    %s140 = sphi 0, %s140
    %s142 = sphi 0, %s140
    %s143 = sphi 0, %s142
    %s157 = sphi 0, %s143
    %s161 = sphi 0, %s161
    %s163 = sphi 0, %s161
    %s164 = sphi 0, %s163
    %s178 = sphi 0, %s164
    %s182 = sphi 0, %s182
    %s184 = sphi 0, %s182
    %s185 = sphi 0, %s184
    %s199 = sphi 0, %s185
    %s207 = sphi 0, %s209
    %s210 = sphi 0, %s207
    %s211 = sphi 0, %s210
    %s227 = sphi 0, %s211
    %s235 = sphi 0, %s237
    %s238 = sphi 0, %s235
    %s239 = sphi 0, %s238
    %s255 = sphi 0, %s239
  $region4: #{_fold_forward_multi.1} parent=0 // loop_header_branch
    %18 = sbr.rel (%p16) target = $region8
  $region5: #{_fold_forward_multi.1} parent=0 // loop_body
    %s20 = ssub.s32 %s15, 1
    %s21 = ssub.s32 %s15, 2
    %s28 = sadd.s32 1, %s23
    %p29 = scmp.ge.s32.totalorder %s28, 1
    %s30 = scalar_select %p29, 0, %s28
    %s31 = sadd.s32 1, %s22
    %s32 = scalar_select %p29, %s31, %s22
    %p33 = scmp.ge.s32.totalorder %s32, 2
    %s34 = scalar_select %p33, 0, %s32
    %s35 = ssub.s32 %s22, %s34
    %s36 = ssub.s32 %s23, %s30
    %s37 = sor.u32 %s35, %s36
    %p38 = scmp.eq.s32.totalorder %s37, 0
    %s40 = sadd.s32 %s39, 1
    %s41 = scalar_select %p38, %s39, %s40
    %p44 = pneg %p38
    %p45 = scmp.eq.s32.totalorder %s15, 1
    %p46 = por %p44, %p45
    %p47 = scmp.ne.s32.totalorder %s39, %s42
    %p48 = scmp.eq.s32.totalorder %s15, 0
    %p49 = por %p47, %p48
    %p50 = scmp.ne.s32.totalorder %s39, %s42
    %p51 = scmp.eq.s32.totalorder %s20, 1
    %p52 = por %p50, %p51
    %p53 = scmp.ne.s32.totalorder %s42, %s43
    %p54 = scmp.eq.s32.totalorder %s20, 0
    %p55 = por %p53, %p54
    %p56 = scmp.ne.s32.totalorder %s42, %s43
    %p57 = scmp.eq.s32.totalorder %s21, 1
    %p58 = por %p56, %p57
    %p60 = scmp.ne.s32.totalorder %s43, %s59
    %p61 = scmp.eq.s32.totalorder %s21, 0
    %p62 = por %p60, %p61
    %s63 = ssub.s32 %s22, %s34
    %s64 = ssub.s32 %s23, %s30
    %s65 = sor.u32 %s63, %s64
    %p66 = scmp.eq.s32.totalorder %s65, 0
    %s68 = sadd.s32 %s67, 1
    %s69 = scalar_select %p66, %s67, %s68
    %p72 = pneg %p66
    %p73 = scmp.eq.s32.totalorder %s15, 1
    %p74 = por %p72, %p73
    %p75 = scmp.ne.s32.totalorder %s67, %s70
    %p76 = scmp.eq.s32.totalorder %s15, 0
    %p77 = por %p75, %p76
    %p78 = scmp.ne.s32.totalorder %s67, %s70
    %p79 = scmp.eq.s32.totalorder %s20, 1
    %p80 = por %p78, %p79
    %p81 = scmp.ne.s32.totalorder %s70, %s71
    %p82 = scmp.eq.s32.totalorder %s20, 0
    %p83 = por %p81, %p82
    %p84 = scmp.ne.s32.totalorder %s70, %s71
    %p85 = scmp.eq.s32.totalorder %s21, 1
    %p86 = por %p84, %p85
    %p88 = scmp.ne.s32.totalorder %s71, %s87
    %p89 = scmp.eq.s32.totalorder %s21, 0
    %p90 = por %p88, %p89
    %s91 = ssub.s32 %s22, %s34
    %s92 = ssub.s32 %s23, %s30
    %s93 = sor.u32 %s91, %s92
    %p94 = scmp.eq.s32.totalorder %s93, 0
    %s96 = sadd.s32 %s95, 1
    %s97 = scalar_select %p94, %s95, %s96
    %p100 = pneg %p94
    %p101 = scmp.eq.s32.totalorder %s15, 1
    %p102 = por %p100, %p101
    %p103 = scmp.ne.s32.totalorder %s95, %s98
    %p104 = scmp.eq.s32.totalorder %s15, 0
    %p105 = por %p103, %p104
    %p106 = scmp.ne.s32.totalorder %s95, %s98
    %p107 = scmp.eq.s32.totalorder %s20, 1
    %p108 = por %p106, %p107
    %p109 = scmp.ne.s32.totalorder %s98, %s99
    %p110 = scmp.eq.s32.totalorder %s20, 0
    %p111 = por %p109, %p110
    %p112 = scmp.ne.s32.totalorder %s98, %s99
    %p113 = scmp.eq.s32.totalorder %s21, 1
    %p114 = por %p112, %p113
    %p116 = scmp.ne.s32.totalorder %s99, %s115
    %p117 = scmp.eq.s32.totalorder %s21, 0
    %p118 = por %p116, %p117
    %s120 = sadd.s32 %s119, 1
    %p123 = scmp.eq.s32.totalorder %s15, 1
    %p124 = scmp.ne.s32.totalorder %s119, %s121
    %p125 = scmp.eq.s32.totalorder %s15, 0
    %p126 = por %p124, %p125
    %p127 = scmp.ne.s32.totalorder %s119, %s121
    %p128 = scmp.eq.s32.totalorder %s20, 1
    %p129 = por %p127, %p128
    %p130 = scmp.ne.s32.totalorder %s121, %s122
    %p131 = scmp.eq.s32.totalorder %s20, 0
    %p132 = por %p130, %p131
    %p133 = scmp.ne.s32.totalorder %s121, %s122
    %p134 = scmp.eq.s32.totalorder %s21, 1
    %p135 = por %p133, %p134
    %p137 = scmp.ne.s32.totalorder %s122, %s136
    %p138 = scmp.eq.s32.totalorder %s21, 0
    %p139 = por %p137, %p138
    %s141 = sadd.s32 %s140, 1
    %p144 = scmp.eq.s32.totalorder %s15, 1
    %p145 = scmp.ne.s32.totalorder %s140, %s142
    %p146 = scmp.eq.s32.totalorder %s15, 0
    %p147 = por %p145, %p146
    %p148 = scmp.ne.s32.totalorder %s140, %s142
    %p149 = scmp.eq.s32.totalorder %s20, 1
    %p150 = por %p148, %p149
    %p151 = scmp.ne.s32.totalorder %s142, %s143
    %p152 = scmp.eq.s32.totalorder %s20, 0
    %p153 = por %p151, %p152
    %p154 = scmp.ne.s32.totalorder %s142, %s143
    %p155 = scmp.eq.s32.totalorder %s21, 1
    %p156 = por %p154, %p155
    %p158 = scmp.ne.s32.totalorder %s143, %s157
    %p159 = scmp.eq.s32.totalorder %s21, 0
    %p160 = por %p158, %p159
    %s162 = sadd.s32 %s161, 1
    %p165 = scmp.eq.s32.totalorder %s15, 1
    %p166 = scmp.ne.s32.totalorder %s161, %s163
    %p167 = scmp.eq.s32.totalorder %s15, 0
    %p168 = por %p166, %p167
    %p169 = scmp.ne.s32.totalorder %s161, %s163
    %p170 = scmp.eq.s32.totalorder %s20, 1
    %p171 = por %p169, %p170
    %p172 = scmp.ne.s32.totalorder %s163, %s164
    %p173 = scmp.eq.s32.totalorder %s20, 0
    %p174 = por %p172, %p173
    %p175 = scmp.ne.s32.totalorder %s163, %s164
    %p176 = scmp.eq.s32.totalorder %s21, 1
    %p177 = por %p175, %p176
    %p179 = scmp.ne.s32.totalorder %s164, %s178
    %p180 = scmp.eq.s32.totalorder %s21, 0
    %p181 = por %p179, %p180
    %s183 = sadd.s32 %s182, 1
    %p186 = scmp.eq.s32.totalorder %s15, 1
    %p187 = scmp.ne.s32.totalorder %s182, %s184
    %p188 = scmp.eq.s32.totalorder %s15, 0
    %p189 = por %p187, %p188
    %p190 = scmp.ne.s32.totalorder %s182, %s184
    %p191 = scmp.eq.s32.totalorder %s20, 1
    %p192 = por %p190, %p191
    %p193 = scmp.ne.s32.totalorder %s184, %s185
    %p194 = scmp.eq.s32.totalorder %s20, 0
    %p195 = por %p193, %p194
    %p196 = scmp.ne.s32.totalorder %s184, %s185
    %p197 = scmp.eq.s32.totalorder %s21, 1
    %p198 = por %p196, %p197
    %p200 = scmp.ne.s32.totalorder %s185, %s199
    %p201 = scmp.eq.s32.totalorder %s21, 0
    %p202 = por %p200, %p201
    %s203 = ssub.s32 %s22, %s34
    %s204 = ssub.s32 %s23, %s30
    %s205 = sor.u32 %s203, %s204
    %p206 = scmp.eq.s32.totalorder %s205, 0
    %s208 = sadd.s32 %s207, 1
    %s209 = scalar_select %p206, %s207, %s208
    %p212 = pneg %p206
    %p213 = scmp.eq.s32.totalorder %s15, 1
    %p214 = por %p212, %p213
    %p215 = scmp.ne.s32.totalorder %s207, %s210
    %p216 = scmp.eq.s32.totalorder %s15, 0
    %p217 = por %p215, %p216
    %p218 = scmp.ne.s32.totalorder %s207, %s210
    %p219 = scmp.eq.s32.totalorder %s20, 1
    %p220 = por %p218, %p219
    %p221 = scmp.ne.s32.totalorder %s210, %s211
    %p222 = scmp.eq.s32.totalorder %s20, 0
    %p223 = por %p221, %p222
    %p224 = scmp.ne.s32.totalorder %s210, %s211
    %p225 = scmp.eq.s32.totalorder %s21, 1
    %p226 = por %p224, %p225
    %p228 = scmp.ne.s32.totalorder %s211, %s227
    %p229 = scmp.eq.s32.totalorder %s21, 0
    %p230 = por %p228, %p229
    %s231 = ssub.s32 %s22, %s34
    %s232 = ssub.s32 %s23, %s30
    %s233 = sor.u32 %s231, %s232
    %p234 = scmp.eq.s32.totalorder %s233, 0
    %s236 = sadd.s32 %s235, 1
    %s237 = scalar_select %p234, %s235, %s236
    %p240 = pneg %p234
    %p241 = scmp.eq.s32.totalorder %s15, 1
    %p242 = por %p240, %p241
    %p243 = scmp.ne.s32.totalorder %s235, %s238
    %p244 = scmp.eq.s32.totalorder %s15, 0
    %p245 = por %p243, %p244
    %p246 = scmp.ne.s32.totalorder %s235, %s238
    %p247 = scmp.eq.s32.totalorder %s20, 1
    %p248 = por %p246, %p247
    %p249 = scmp.ne.s32.totalorder %s238, %s239
    %p250 = scmp.eq.s32.totalorder %s20, 0
    %p251 = por %p249, %p250
    %p252 = scmp.ne.s32.totalorder %s238, %s239
    %p253 = scmp.eq.s32.totalorder %s21, 1
    %p254 = por %p252, %p253
    %p256 = scmp.ne.s32.totalorder %s239, %s255
    %p257 = scmp.eq.s32.totalorder %s21, 0
    %p258 = por %p256, %p257
    %p259 = scmp.le.s32.totalorder 1, %s15
    %p260 = scmp.lt.s32.totalorder %s15, 3
    %p261 = pnand %p259, %p260
    %p262 = pneg %p261
    // Predicated region
    $region9: #{_fold_forward_multi.1} parent=5 // pred_check
      _
    $region10: #{_fold_forward_multi.1} parent=5 // pred_check_branch
      %264 = sbr.rel (%p261) target = $region12
    $region11: #{_fold_forward_multi.1} parent=5 // pred_region
      %s265 = ssub.s32 %s15, 1
      // Predicated region
      $region13: #{_fold_forward_multi.1} parent=11 // pred_check
        %p266 = pneg %p132
      $region14: #{_fold_forward_multi.1} parent=11 // pred_check_branch
        %268 = sbr.rel (%p266) target = $region16
      $region15: #{_fold_forward_multi.1} parent=11 // pred_region
        _
      $region16: #{_fold_forward_multi.1} parent=11 // pred_fallthru
        _
      // Predicated region
      $region17: #{_fold_forward_multi.1} parent=11 // pred_check
        %p269 = pneg %p153
      $region18: #{_fold_forward_multi.1} parent=11 // pred_check_branch
        %271 = sbr.rel (%p269) target = $region20
      $region19: #{_fold_forward_multi.1} parent=11 // pred_region
        _
      $region20: #{_fold_forward_multi.1} parent=11 // pred_fallthru
        _
      // Predicated region
      $region21: #{_fold_forward_multi.1} parent=11 // pred_check
        %p272 = pneg %p174
      $region22: #{_fold_forward_multi.1} parent=11 // pred_check_branch
        %274 = sbr.rel (%p272) target = $region24
      $region23: #{_fold_forward_multi.1} parent=11 // pred_region
        _
      $region24: #{_fold_forward_multi.1} parent=11 // pred_fallthru
        _
      // Predicated region
      $region25: #{_fold_forward_multi.1} parent=11 // pred_check
        %p275 = pneg %p195
      $region26: #{_fold_forward_multi.1} parent=11 // pred_check_branch
        %277 = sbr.rel (%p275) target = $region28
      $region27: #{_fold_forward_multi.1} parent=11 // pred_region
        _
      $region28: #{_fold_forward_multi.1} parent=11 // pred_fallthru
        _
    $region12: #{_fold_forward_multi.1} parent=5 // pred_fallthru
      _
    %p278 = scmp.lt.s32.totalorder %s15, 2
    // Predicated region
    $region29: #{_fold_forward_multi.1} parent=5 // pred_check
      %p279 = pneg %p278
    $region30: #{_fold_forward_multi.1} parent=5 // pred_check_branch
      %281 = sbr.rel (%p279) target = $region32
    $region31: #{_fold_forward_multi.1} parent=5 // pred_region
      // Predicated region
      $region33: #{_fold_forward_multi.1} parent=31 // pred_check
        %p282 = pneg %p49
      $region34: #{_fold_forward_multi.1} parent=31 // pred_check_branch
        %284 = sbr.rel (%p282) target = $region36
      $region35: #{_fold_forward_multi.1} parent=31 // pred_region
        %s285 = smul.u32 2, %s23
        %p286 = scmp.lt.s32.totalorder %s22, 1
        %s287 = scalar_select %p286, %s22, 1
        %p288 = scmp.lt.s32.totalorder %s285, 1
        %s289 = scalar_select %p288, %s285, 1
        %s290 = smul.addr %s287, 2
        %s291 = sadd.s32 %s289, %s290
        %s292 = smul.addr %s291, 4
        %s293 = scalar_lea.vmem %s0, %s292
        %s294 = smul.u32 2, %s23
      $region36: #{_fold_forward_multi.1} parent=31 // pred_fallthru
        _
      // Predicated region
      $region37: #{_fold_forward_multi.1} parent=31 // pred_check
        %p295 = pneg %p77
      $region38: #{_fold_forward_multi.1} parent=31 // pred_check_branch
        %297 = sbr.rel (%p295) target = $region40
      $region39: #{_fold_forward_multi.1} parent=31 // pred_region
        %s298 = smul.u32 2, %s23
        %p299 = scmp.lt.s32.totalorder %s22, 1
        %s300 = scalar_select %p299, %s22, 1
        %p301 = scmp.lt.s32.totalorder %s298, 1
        %s302 = scalar_select %p301, %s298, 1
        %s303 = smul.addr %s300, 2
        %s304 = sadd.s32 %s302, %s303
        %s305 = smul.addr %s304, 4
        %s306 = scalar_lea.vmem %s1, %s305
        %s307 = smul.u32 2, %s23
      $region40: #{_fold_forward_multi.1} parent=31 // pred_fallthru
        _
      // Predicated region
      $region41: #{_fold_forward_multi.1} parent=31 // pred_check
        %p308 = pneg %p105
      $region42: #{_fold_forward_multi.1} parent=31 // pred_check_branch
        %310 = sbr.rel (%p308) target = $region44
      $region43: #{_fold_forward_multi.1} parent=31 // pred_region
        %s311 = smul.u32 2, %s23
        %p312 = scmp.lt.s32.totalorder %s22, 1
        %s313 = scalar_select %p312, %s22, 1
        %p314 = scmp.lt.s32.totalorder %s311, 1
        %s315 = scalar_select %p314, %s311, 1
        %s316 = smul.addr %s313, 2
        %s317 = sadd.s32 %s315, %s316
        %s318 = smul.addr %s317, 4
        %s319 = scalar_lea.vmem %s2, %s318
        %s320 = smul.u32 2, %s23
      $region44: #{_fold_forward_multi.1} parent=31 // pred_fallthru
        _
    $region32: #{_fold_forward_multi.1} parent=5 // pred_fallthru
      _
    %p321 = scmp.le.s32.totalorder 1, %s15
    %p322 = scmp.lt.s32.totalorder %s15, 3
    %p323 = pnand %p321, %p322
    %p324 = pneg %p323
    // Predicated region
    $region45: #{_fold_forward_multi.1} parent=5 // pred_check
      _
    $region46: #{_fold_forward_multi.1} parent=5 // pred_check_branch
      %326 = sbr.rel (%p323) target = $region48
    $region47: #{_fold_forward_multi.1} parent=5 // pred_region
      %s327 = ssub.s32 %s15, 1
      %s328 = smul.u32 2, %s25
      %p329 = scmp.lt.s32.totalorder %s24, 1
      %s330 = scalar_select %p329, %s24, 1
      %p331 = scmp.lt.s32.totalorder %s328, 1
      %s332 = scalar_select %p331, %s328, 1
      %s333 = smul.addr %s330, 2
      %s334 = sadd.s32 %s332, %s333
      %s335 = smul.addr %s334, 4
      %s336 = scalar_lea.vmem %s0, %s335
      %p337 = pneg %p55
      %p338 = pneg %p52
      %s339 = smul.u32 2, %s25
      %p340 = scmp.lt.s32.totalorder %s24, 1
      %s341 = scalar_select %p340, %s24, 1
      %p342 = scmp.lt.s32.totalorder %s339, 1
      %s343 = scalar_select %p342, %s339, 1
      %s344 = smul.addr %s341, 2
      %s345 = sadd.s32 %s343, %s344
      %s346 = smul.addr %s345, 4
      %s347 = scalar_lea.vmem %s1, %s346
      %p348 = pneg %p83
      %p349 = pneg %p80
      %s350 = smul.u32 2, %s25
      %p351 = scmp.lt.s32.totalorder %s24, 1
      %s352 = scalar_select %p351, %s24, 1
      %p353 = scmp.lt.s32.totalorder %s350, 1
      %s354 = scalar_select %p353, %s350, 1
      %s355 = smul.addr %s352, 2
      %s356 = sadd.s32 %s354, %s355
      %s357 = smul.addr %s356, 4
      %s358 = scalar_lea.vmem %s2, %s357
      %p359 = pneg %p111
      %p360 = pneg %p108
      %p361 = pneg %p132
      %p362 = pneg %p129
      %p363 = pneg %p153
      %p364 = pneg %p150
      %p365 = pneg %p174
      %p366 = pneg %p171
      %p367 = pneg %p195
      %p368 = pneg %p192
      %p369 = pneg %p223
      %p370 = pneg %p220
      %s371 = smul.u32 2, %s25
      %p372 = scmp.lt.s32.totalorder %s24, 1
      %s373 = scalar_select %p372, %s24, 1
      %p374 = scmp.lt.s32.totalorder %s371, 1
      %s375 = scalar_select %p374, %s371, 1
      %s376 = smul.addr %s373, 2
      %s377 = sadd.s32 %s375, %s376
      %s378 = smul.addr %s377, 4
      %s379 = scalar_lea.vmem %s7, %s378
      %p380 = pneg %p251
      %p381 = pneg %p248
      %s382 = smul.u32 2, %s25
      %p383 = scmp.lt.s32.totalorder %s24, 1
      %s384 = scalar_select %p383, %s24, 1
      %p385 = scmp.lt.s32.totalorder %s382, 1
      %s386 = scalar_select %p385, %s382, 1
      %s387 = smul.addr %s384, 2
      %s388 = sadd.s32 %s386, %s387
      %s389 = smul.addr %s388, 4
      %s390 = scalar_lea.vmem %s8, %s389
      %s391 = smul.u32 2, %s25
      %p392 = scmp.lt.s32.totalorder %s24, 1
      %s393 = scalar_select %p392, %s24, 1
      %p394 = scmp.lt.s32.totalorder %s391, 1
      %s395 = scalar_select %p394, %s391, 1
      %s396 = smul.addr %s393, 2
      %s397 = sadd.s32 %s395, %s396
      %s398 = smul.addr %s397, 4
      %s399 = scalar_lea.vmem %s0, %s398
      %s400 = smul.u32 2, %s25
      %s401 = smul.u32 2, %s25
      %p402 = scmp.lt.s32.totalorder %s24, 1
      %s403 = scalar_select %p402, %s24, 1
      %p404 = scmp.lt.s32.totalorder %s401, 1
      %s405 = scalar_select %p404, %s401, 1
      %s406 = smul.addr %s403, 2
      %s407 = sadd.s32 %s405, %s406
      %s408 = smul.addr %s407, 4
      %s409 = scalar_lea.vmem %s1, %s408
      %s410 = smul.u32 2, %s25
      %s411 = smul.u32 2, %s25
      %p412 = scmp.lt.s32.totalorder %s24, 1
      %s413 = scalar_select %p412, %s24, 1
      %p414 = scmp.lt.s32.totalorder %s411, 1
      %s415 = scalar_select %p414, %s411, 1
      %s416 = smul.addr %s413, 2
      %s417 = sadd.s32 %s415, %s416
      %s418 = smul.addr %s417, 4
      %s419 = scalar_lea.vmem %s2, %s418
      %s420 = smul.u32 2, %s25
      %s421 = smul.u32 2, %s25
      %p422 = scmp.lt.s32.totalorder %s24, 1
      %s423 = scalar_select %p422, %s24, 1
      %p424 = scmp.lt.s32.totalorder %s421, 1
      %s425 = scalar_select %p424, %s421, 1
      %s426 = smul.addr %s423, 2
      %s427 = sadd.s32 %s425, %s426
      %s428 = smul.addr %s427, 4
      %s429 = scalar_lea.vmem %s7, %s428
      %s430 = smul.u32 2, %s25
      %s431 = smul.u32 2, %s25
      %p432 = scmp.lt.s32.totalorder %s24, 1
      %s433 = scalar_select %p432, %s24, 1
      %p434 = scmp.lt.s32.totalorder %s431, 1
      %s435 = scalar_select %p434, %s431, 1
      %s436 = smul.addr %s433, 2
      %s437 = sadd.s32 %s435, %s436
      %s438 = smul.addr %s437, 4
      %s439 = scalar_lea.vmem %s8, %s438
      %s440 = smul.u32 2, %s25
      %v441 = vld [vmem:[%s399] sm:$0xff]
      %v442 = vld [vmem:[%s409] sm:$0xff]
      %v443 = vld [vmem:[%s3] sm:$0xff]
      %v444 = vld [vmem:[%s3 + $0x8] sm:$0xff]
      %v445 = vld [vmem:[%s3 + $0x10] sm:$0xff]
      %v446 = vld [vmem:[%s3 + $0x18] sm:$0xff]
      %v447 = vld [vmem:[%s4] sm:$0xff]
      %v448 = vld [vmem:[%s4 + $0x8] sm:$0xff]
      %v449 = vld [vmem:[%s4 + $0x10] sm:$0xff]
      %v450 = vld [vmem:[%s4 + $0x18] sm:$0xff]
      %452 = vset.pattern.permute.xlu0 0
      %453 = vperm.xlu0 %452, %v443
      %v454 = vpop.permute.xlu0 %453
      %457 = vset.pattern.permute.xlu0 0
      %458 = vperm.xlu0 %457, %v444
      %v459 = vpop.permute.xlu0 %458
      %462 = vset.pattern.permute.xlu0 0
      %463 = vperm.xlu0 %462, %v445
      %v464 = vpop.permute.xlu0 %463
      %467 = vset.pattern.permute.xlu0 0
      %468 = vperm.xlu0 %467, %v446
      %v469 = vpop.permute.xlu0 %468
      %v472 = vlaneseq
      %v473 = vshrl.u32 %v472, 7
      %v474 = vsub.s32 0, %v473
      %v475 = vrot.slane %v441, %v474
      %v476 = vlaneseq
      %v477 = vshrl.u32 %v476, 7
      %v478 = vsub.s32 4, %v477
      %v479 = vrot.slane %v441, %v478
      %v482 = vlaneseq
      %v483 = vshrl.u32 %v482, 7
      %v484 = vsub.s32 0, %v483
      %v485 = vrot.slane %v475, %v484
      %v486 = vlaneseq
      %v487 = vshrl.u32 %v486, 7
      %v488 = vsub.s32 0, %v487
      %v489 = vrot.slane %v479, %v488
      %v490 = vmul.f32 %v454, %v485
      %v491 = vmul.f32 %v454, %v489
      %v492 = vmul.f32 %v459, %v485
      %v493 = vmul.f32 %v459, %v489
      %v494 = vmul.f32 %v464, %v485
      %v495 = vmul.f32 %v464, %v489
      %v496 = vmul.f32 %v469, %v485
      %v497 = vmul.f32 %v469, %v489
      %499 = vset.pattern.permute.xlu0 0
      %500 = vperm.xlu0 %499, %v447
      %v501 = vpop.permute.xlu0 %500
      %504 = vset.pattern.permute.xlu0 0
      %505 = vperm.xlu0 %504, %v448
      %v506 = vpop.permute.xlu0 %505
      %509 = vset.pattern.permute.xlu0 0
      %510 = vperm.xlu0 %509, %v449
      %v511 = vpop.permute.xlu0 %510
      %514 = vset.pattern.permute.xlu0 0
      %515 = vperm.xlu0 %514, %v450
      %v516 = vpop.permute.xlu0 %515
      %v518 = vadd.f32 %v501, %v490
      %v519 = vadd.f32 %v501, %v491
      %v520 = vadd.f32 %v506, %v492
      %v521 = vadd.f32 %v506, %v493
      %v522 = vadd.f32 %v511, %v494
      %v523 = vadd.f32 %v511, %v495
      %v524 = vadd.f32 %v516, %v496
      %v525 = vadd.f32 %v516, %v497
      %526 = vset.pattern.permute.xlu0 1
      %527 = vperm.xlu0 %526, %v443
      %v528 = vpop.permute.xlu0 %527
      %530 = vset.pattern.permute.xlu0 1
      %531 = vperm.xlu0 %530, %v444
      %v532 = vpop.permute.xlu0 %531
      %534 = vset.pattern.permute.xlu0 1
      %535 = vperm.xlu0 %534, %v445
      %v536 = vpop.permute.xlu0 %535
      %538 = vset.pattern.permute.xlu0 1
      %539 = vperm.xlu0 %538, %v446
      %v540 = vpop.permute.xlu0 %539
      %v542 = vlaneseq
      %v543 = vshrl.u32 %v542, 7
      %v544 = vsub.s32 1, %v543
      %v545 = vrot.slane %v441, %v544
      %v546 = vlaneseq
      %v547 = vshrl.u32 %v546, 7
      %v548 = vsub.s32 5, %v547
      %v549 = vrot.slane %v441, %v548
      %v552 = vlaneseq
      %v553 = vshrl.u32 %v552, 7
      %v554 = vsub.s32 1, %v553
      %v555 = vrot.slane %v545, %v554
      %v556 = vlaneseq
      %v557 = vshrl.u32 %v556, 7
      %v558 = vsub.s32 1, %v557
      %v559 = vrot.slane %v549, %v558
      %v560 = vmul.f32 %v528, %v555
      %v561 = vmul.f32 %v528, %v559
      %v562 = vmul.f32 %v532, %v555
      %v563 = vmul.f32 %v532, %v559
      %v564 = vmul.f32 %v536, %v555
      %v565 = vmul.f32 %v536, %v559
      %v566 = vmul.f32 %v540, %v555
      %v567 = vmul.f32 %v540, %v559
      %v568 = vadd.f32 %v518, %v560
      %v569 = vadd.f32 %v519, %v561
      %v570 = vadd.f32 %v520, %v562
      %v571 = vadd.f32 %v521, %v563
      %v572 = vadd.f32 %v522, %v564
      %v573 = vadd.f32 %v523, %v565
      %v574 = vadd.f32 %v524, %v566
      %v575 = vadd.f32 %v525, %v567
      %576 = vset.pattern.permute.xlu0 2
      %577 = vperm.xlu0 %576, %v443
      %v578 = vpop.permute.xlu0 %577
      %580 = vset.pattern.permute.xlu0 2
      %581 = vperm.xlu0 %580, %v444
      %v582 = vpop.permute.xlu0 %581
      %584 = vset.pattern.permute.xlu0 2
      %585 = vperm.xlu0 %584, %v445
      %v586 = vpop.permute.xlu0 %585
      %588 = vset.pattern.permute.xlu0 2
      %589 = vperm.xlu0 %588, %v446
      %v590 = vpop.permute.xlu0 %589
      %v592 = vlaneseq
      %v593 = vshrl.u32 %v592, 7
      %v594 = vsub.s32 2, %v593
      %v595 = vrot.slane %v441, %v594
      %v596 = vlaneseq
      %v597 = vshrl.u32 %v596, 7
      %v598 = vsub.s32 6, %v597
      %v599 = vrot.slane %v441, %v598
      %v602 = vlaneseq
      %v603 = vshrl.u32 %v602, 7
      %v604 = vsub.s32 2, %v603
      %v605 = vrot.slane %v595, %v604
      %v606 = vlaneseq
      %v607 = vshrl.u32 %v606, 7
      %v608 = vsub.s32 2, %v607
      %v609 = vrot.slane %v599, %v608
      %v610 = vmul.f32 %v578, %v605
      %v611 = vmul.f32 %v578, %v609
      %v612 = vmul.f32 %v582, %v605
      %v613 = vmul.f32 %v582, %v609
      %v614 = vmul.f32 %v586, %v605
      %v615 = vmul.f32 %v586, %v609
      %v616 = vmul.f32 %v590, %v605
      %v617 = vmul.f32 %v590, %v609
      %v618 = vadd.f32 %v568, %v610
      %v619 = vadd.f32 %v569, %v611
      %v620 = vadd.f32 %v570, %v612
      %v621 = vadd.f32 %v571, %v613
      %v622 = vadd.f32 %v572, %v614
      %v623 = vadd.f32 %v573, %v615
      %v624 = vadd.f32 %v574, %v616
      %v625 = vadd.f32 %v575, %v617
      %626 = vset.pattern.permute.xlu0 3
      %627 = vperm.xlu0 %626, %v443
      %v628 = vpop.permute.xlu0 %627
      %630 = vset.pattern.permute.xlu0 3
      %631 = vperm.xlu0 %630, %v444
      %v632 = vpop.permute.xlu0 %631
      %634 = vset.pattern.permute.xlu0 3
      %635 = vperm.xlu0 %634, %v445
      %v636 = vpop.permute.xlu0 %635
      %638 = vset.pattern.permute.xlu0 3
      %639 = vperm.xlu0 %638, %v446
      %v640 = vpop.permute.xlu0 %639
      %v642 = vlaneseq
      %v643 = vshrl.u32 %v642, 7
      %v644 = vsub.s32 3, %v643
      %v645 = vrot.slane %v441, %v644
      %v646 = vlaneseq
      %v647 = vshrl.u32 %v646, 7
      %v648 = vsub.s32 7, %v647
      %v649 = vrot.slane %v441, %v648
      %v652 = vlaneseq
      %v653 = vshrl.u32 %v652, 7
      %v654 = vsub.s32 3, %v653
      %v655 = vrot.slane %v645, %v654
      %v656 = vlaneseq
      %v657 = vshrl.u32 %v656, 7
      %v658 = vsub.s32 3, %v657
      %v659 = vrot.slane %v649, %v658
      %v660 = vmul.f32 %v628, %v655
      %v661 = vmul.f32 %v628, %v659
      %v662 = vmul.f32 %v632, %v655
      %v663 = vmul.f32 %v632, %v659
      %v664 = vmul.f32 %v636, %v655
      %v665 = vmul.f32 %v636, %v659
      %v666 = vmul.f32 %v640, %v655
      %v667 = vmul.f32 %v640, %v659
      %v668 = vadd.f32 %v618, %v660
      %v669 = vadd.f32 %v619, %v661
      %v670 = vadd.f32 %v620, %v662
      %v671 = vadd.f32 %v621, %v663
      %v672 = vadd.f32 %v622, %v664
      %v673 = vadd.f32 %v623, %v665
      %v674 = vadd.f32 %v624, %v666
      %v675 = vadd.f32 %v625, %v667
      %v676 = vmul.f32 %v668, %v668
      %v677 = vmul.f32 %v669, %v669
      %v678 = vmul.f32 %v670, %v670
      %v679 = vmul.f32 %v671, %v671
      %v680 = vmul.f32 %v672, %v672
      %v681 = vmul.f32 %v673, %v673
      %v682 = vmul.f32 %v674, %v674
      %v683 = vmul.f32 %v675, %v675
      %v684 = vmul.f32 %v668, %v676
      %v685 = vmul.f32 %v669, %v677
      %v686 = vmul.f32 %v670, %v678
      %v687 = vmul.f32 %v671, %v679
      %v688 = vmul.f32 %v672, %v680
      %v689 = vmul.f32 %v673, %v681
      %v690 = vmul.f32 %v674, %v682
      %v691 = vmul.f32 %v675, %v683
      %v692 = vmul.f32 %v684, 0.044715
      %v693 = vmul.f32 %v685, 0.044715
      %v694 = vmul.f32 %v686, 0.044715
      %v695 = vmul.f32 %v687, 0.044715
      %v696 = vmul.f32 %v688, 0.044715
      %v697 = vmul.f32 %v689, 0.044715
      %v698 = vmul.f32 %v690, 0.044715
      %v699 = vmul.f32 %v691, 0.044715
      %v700 = vadd.f32 %v668, %v692
      %v701 = vadd.f32 %v669, %v693
      %v702 = vadd.f32 %v670, %v694
      %v703 = vadd.f32 %v671, %v695
      %v704 = vadd.f32 %v672, %v696
      %v705 = vadd.f32 %v673, %v697
      %v706 = vadd.f32 %v674, %v698
      %v707 = vadd.f32 %v675, %v699
      %v708 = vmul.f32 %v700, 0.7978846
      %v709 = vmul.f32 %v701, 0.7978846
      %v710 = vmul.f32 %v702, 0.7978846
      %v711 = vmul.f32 %v703, 0.7978846
      %v712 = vmul.f32 %v704, 0.7978846
      %v713 = vmul.f32 %v705, 0.7978846
      %v714 = vmul.f32 %v706, 0.7978846
      %v715 = vmul.f32 %v707, 0.7978846
      %v716 = vtanh.pop %v708
      %v717 = vtanh.pop %v709
      %v718 = vtanh.pop %v710
      %v719 = vtanh.pop %v711
      %v720 = vtanh.pop %v712
      %v721 = vtanh.pop %v713
      %v722 = vtanh.pop %v714
      %v723 = vtanh.pop %v715
      %v724 = vadd.f32 %v716, 1.0
      %v725 = vadd.f32 %v717, 1.0
      %v726 = vadd.f32 %v718, 1.0
      %v727 = vadd.f32 %v719, 1.0
      %v728 = vadd.f32 %v720, 1.0
      %v729 = vadd.f32 %v721, 1.0
      %v730 = vadd.f32 %v722, 1.0
      %v731 = vadd.f32 %v723, 1.0
      %v732 = vmul.f32 %v724, 0.5
      %v733 = vmul.f32 %v725, 0.5
      %v734 = vmul.f32 %v726, 0.5
      %v735 = vmul.f32 %v727, 0.5
      %v736 = vmul.f32 %v728, 0.5
      %v737 = vmul.f32 %v729, 0.5
      %v738 = vmul.f32 %v730, 0.5
      %v739 = vmul.f32 %v731, 0.5
      %v740 = vmul.f32 %v668, %v732
      %v741 = vmul.f32 %v669, %v733
      %v742 = vmul.f32 %v670, %v734
      %v743 = vmul.f32 %v671, %v735
      %v744 = vmul.f32 %v672, %v736
      %v745 = vmul.f32 %v673, %v737
      %v746 = vmul.f32 %v674, %v738
      %v747 = vmul.f32 %v675, %v739
      %v748 = vld [vmem:[%s5] sm:$0xf]
      %v749 = vld [vmem:[%s6] sm:$0xf]
      %751 = vset.pattern.permute.xlu0 0
      %752 = vperm.xlu0 %751, %v749
      %v753 = vpop.permute.xlu0 %752
      %vm755 = vcmask 261120
      %v757 = vsel %vm755, %v748, 0
      %v759 = vand.u32 %v741, 4294901760
      %760 = vmatprep.subr.mxu0 %v759
      %v761 = vand.u32 %v740, 4294901760
      %762 = vmatpush1.msra.mxu0 %v761
      %v763 = vand.u32 %v743, 4294901760
      %764 = vmatprep.subr.mxu0 %v763
      %v765 = vand.u32 %v742, 4294901760
      %766 = vmatpush1.msra.mxu0 %v765
      %v767 = vand.u32 %v745, 4294901760
      %768 = vmatprep.subr.mxu0 %v767
      %v769 = vand.u32 %v744, 4294901760
      %770 = vmatpush1.msra.mxu0 %v769
      %v771 = vand.u32 %v747, 4294901760
      %772 = vmatprep.subr.mxu0 %v771
      %v773 = vand.u32 %v746, 4294901760
      %774 = vmatpush1.msra.mxu0 %v773
      %775 = vmatprep.subr.mxu0 0.0
      %776 = vmatpush1.msra.mxu0 0.0
      %777 = vmatprep.subr.mxu0 0.0
      %778 = vmatpush1.msra.mxu0 0.0
      %779 = vmatprep.subr.mxu0 0.0
      %780 = vmatpush1.msra.mxu0 0.0
      %781 = vmatprep.subr.mxu0 0.0
      %782 = vmatpush1.msra.mxu0 0.0
      %783 = vmatprep.subr.mxu0 0.0
      %784 = vmatpush1.msra.mxu0 0.0
      %785 = vmatprep.subr.mxu0 0.0
      %786 = vmatpush1.msra.mxu0 0.0
      %787 = vmatprep.subr.mxu0 0.0
      %788 = vmatpush1.msra.mxu0 0.0
      %789 = vmatprep.subr.mxu0 0.0
      %790 = vmatpush1.msra.mxu0 0.0
      %791 = vmatprep.subr.mxu0 0.0
      %792 = vmatpush1.msra.mxu0 0.0
      %793 = vmatprep.subr.mxu0 0.0
      %794 = vmatpush1.msra.mxu0 0.0
      %795 = vmatprep.subr.mxu0 0.0
      %796 = vmatpush1.msra.mxu0 0.0
      %797 = vmatprep.subr.mxu0 0.0
      %798 = vmatpush1.msra.mxu0 0.0
      %799 = vmatprep.subr.mxu0 0.0
      %800 = vmatpush1.msra.mxu0 0.0
      %801 = vmatprep.subr.mxu0 0.0
      %802 = vmatpush1.msra.mxu0 0.0
      %803 = vmatprep.subr.mxu0 0.0
      %804 = vmatpush1.msra.mxu0 0.0
      %805 = vmatprep.subr.mxu0 0.0
      %806 = vmatpush1.msra.mxu0 0.0
      %807 = vmatprep.subr.mxu0 0.0
      %808 = vmatpush1.msra.mxu0 0.0
      %809 = vmatprep.subr.mxu0 0.0
      %810 = vmatpush1.msra.mxu0 0.0
      %811 = vmatprep.subr.mxu0 0.0
      %812 = vmatpush1.msra.mxu0 0.0
      %813 = vmatprep.subr.mxu0 0.0
      %814 = vmatpush1.msra.mxu0 0.0
      %815 = vmatprep.subr.mxu0 0.0
      %816 = vmatpush1.msra.mxu0 0.0
      %817 = vmatprep.subr.mxu0 0.0
      %818 = vmatpush1.msra.mxu0 0.0
      %819 = vmatprep.subr.mxu0 0.0
      %820 = vmatpush1.msra.mxu0 0.0
      %821 = vmatprep.subr.mxu0 0.0
      %822 = vmatpush1.msra.mxu0 0.0
      %823 = vmatprep.subr.mxu0 0.0
      %824 = vmatpush1.msra.mxu0 0.0
      %825 = vmatprep.subr.mxu0 0.0
      %826 = vmatpush1.msra.mxu0 0.0
      %827 = vmatprep.subr.mxu0 0.0
      %828 = vmatpush1.msra.mxu0 0.0
      %829 = vmatprep.subr.mxu0 0.0
      %830 = vmatpush1.msra.mxu0 0.0
      %831 = vmatprep.mubr.f32.mxu0 0.0
      %v832 = vand.u32 %v757, 4294901760
      %v833 = vsub.f32 %v757, %v832
      %v834 = vand.u32 %v833, 4294901760
      %v835 = vsub.f32 %v833, %v834
      %v836 = vand.u32 %v835, 4294901760
      %837 = vmatmul.mubr.f32.gmra.mrb[0].mxu0 %v836
      %v838 = vpop.f32.mrb[0].mxu0
      %v839 = vadd.f32 %v753, %v838
      %v840 = vpop.f32.mrb[0].mxu0
      %v841 = vadd.f32 %v753, %v840
      %842 = vdwg.mxu0
      %v843 = vand.u32 %v741, 4294901760
      %v844 = vsub.f32 %v741, %v843
      %v845 = vand.u32 %v844, 4294901760
      %v846 = vsub.f32 %v844, %v845
      %v847 = vand.u32 %v846, 4294901760
      %848 = vmatprep.subr.mxu0 %v847
      %v849 = vand.u32 %v740, 4294901760
      %v850 = vsub.f32 %v740, %v849
      %v851 = vand.u32 %v850, 4294901760
      %v852 = vsub.f32 %v850, %v851
      %v853 = vand.u32 %v852, 4294901760
      %854 = vmatpush1.msra.mxu0 %v853
      %v855 = vand.u32 %v743, 4294901760
      %v856 = vsub.f32 %v743, %v855
      %v857 = vand.u32 %v856, 4294901760
      %v858 = vsub.f32 %v856, %v857
      %v859 = vand.u32 %v858, 4294901760
      %860 = vmatprep.subr.mxu0 %v859
      %v861 = vand.u32 %v742, 4294901760
      %v862 = vsub.f32 %v742, %v861
      %v863 = vand.u32 %v862, 4294901760
      %v864 = vsub.f32 %v862, %v863
      %v865 = vand.u32 %v864, 4294901760
      %866 = vmatpush1.msra.mxu0 %v865
      %v867 = vand.u32 %v745, 4294901760
      %v868 = vsub.f32 %v745, %v867
      %v869 = vand.u32 %v868, 4294901760
      %v870 = vsub.f32 %v868, %v869
      %v871 = vand.u32 %v870, 4294901760
      %872 = vmatprep.subr.mxu0 %v871
      %v873 = vand.u32 %v744, 4294901760
      %v874 = vsub.f32 %v744, %v873
      %v875 = vand.u32 %v874, 4294901760
      %v876 = vsub.f32 %v874, %v875
      %v877 = vand.u32 %v876, 4294901760
      %878 = vmatpush1.msra.mxu0 %v877
      %v879 = vand.u32 %v747, 4294901760
      %v880 = vsub.f32 %v747, %v879
      %v881 = vand.u32 %v880, 4294901760
      %v882 = vsub.f32 %v880, %v881
      %v883 = vand.u32 %v882, 4294901760
      %884 = vmatprep.subr.mxu0 %v883
      %v885 = vand.u32 %v746, 4294901760
      %v886 = vsub.f32 %v746, %v885
      %v887 = vand.u32 %v886, 4294901760
      %v888 = vsub.f32 %v886, %v887
      %v889 = vand.u32 %v888, 4294901760
      %890 = vmatpush1.msra.mxu0 %v889
      %891 = vmatprep.subr.mxu0 0.0
      %892 = vmatpush1.msra.mxu0 0.0
      %893 = vmatprep.subr.mxu0 0.0
      %894 = vmatpush1.msra.mxu0 0.0
      %895 = vmatprep.subr.mxu0 0.0
      %896 = vmatpush1.msra.mxu0 0.0
      %897 = vmatprep.subr.mxu0 0.0
      %898 = vmatpush1.msra.mxu0 0.0
      %899 = vmatprep.subr.mxu0 0.0
      %900 = vmatpush1.msra.mxu0 0.0
      %901 = vmatprep.subr.mxu0 0.0
      %902 = vmatpush1.msra.mxu0 0.0
      %903 = vmatprep.subr.mxu0 0.0
      %904 = vmatpush1.msra.mxu0 0.0
      %905 = vmatprep.subr.mxu0 0.0
      %906 = vmatpush1.msra.mxu0 0.0
      %907 = vmatprep.subr.mxu0 0.0
      %908 = vmatpush1.msra.mxu0 0.0
      %909 = vmatprep.subr.mxu0 0.0
      %910 = vmatpush1.msra.mxu0 0.0
      %911 = vmatprep.subr.mxu0 0.0
      %912 = vmatpush1.msra.mxu0 0.0
      %913 = vmatprep.subr.mxu0 0.0
      %914 = vmatpush1.msra.mxu0 0.0
      %915 = vmatprep.subr.mxu0 0.0
      %916 = vmatpush1.msra.mxu0 0.0
      %917 = vmatprep.subr.mxu0 0.0
      %918 = vmatpush1.msra.mxu0 0.0
      %919 = vmatprep.subr.mxu0 0.0
      %920 = vmatpush1.msra.mxu0 0.0
      %921 = vmatprep.subr.mxu0 0.0
      %922 = vmatpush1.msra.mxu0 0.0
      %923 = vmatprep.subr.mxu0 0.0
      %924 = vmatpush1.msra.mxu0 0.0
      %925 = vmatprep.subr.mxu0 0.0
      %926 = vmatpush1.msra.mxu0 0.0
      %927 = vmatprep.subr.mxu0 0.0
      %928 = vmatpush1.msra.mxu0 0.0
      %929 = vmatprep.subr.mxu0 0.0
      %930 = vmatpush1.msra.mxu0 0.0
      %931 = vmatprep.subr.mxu0 0.0
      %932 = vmatpush1.msra.mxu0 0.0
      %933 = vmatprep.subr.mxu0 0.0
      %934 = vmatpush1.msra.mxu0 0.0
      %935 = vmatprep.subr.mxu0 0.0
      %936 = vmatpush1.msra.mxu0 0.0
      %937 = vmatprep.subr.mxu0 0.0
      %938 = vmatpush1.msra.mxu0 0.0
      %939 = vmatprep.subr.mxu0 0.0
      %940 = vmatpush1.msra.mxu0 0.0
      %941 = vmatprep.subr.mxu0 0.0
      %942 = vmatpush1.msra.mxu0 0.0
      %943 = vmatprep.subr.mxu0 0.0
      %944 = vmatpush1.msra.mxu0 0.0
      %945 = vmatprep.subr.mxu0 0.0
      %946 = vmatpush1.msra.mxu0 0.0
      %947 = vmatprep.mubr.f32.mxu0 0.0
      %v948 = vand.u32 %v757, 4294901760
      %949 = vmatmul.mubr.f32.gmra.mrb[0].mxu0 %v948
      %v950 = vpop.f32.mrb[0].mxu0
      %v951 = vadd.f32 %v839, %v950
      %v952 = vpop.f32.mrb[0].mxu0
      %v953 = vadd.f32 %v841, %v952
      %954 = vdwg.mxu0
      %v955 = vand.u32 %v741, 4294901760
      %v956 = vsub.f32 %v741, %v955
      %957 = vmatprep.subr.mxu0 %v956
      %v958 = vand.u32 %v740, 4294901760
      %v959 = vsub.f32 %v740, %v958
      %960 = vmatpush1.msra.mxu0 %v959
      %v961 = vand.u32 %v743, 4294901760
      %v962 = vsub.f32 %v743, %v961
      %963 = vmatprep.subr.mxu0 %v962
      %v964 = vand.u32 %v742, 4294901760
      %v965 = vsub.f32 %v742, %v964
      %966 = vmatpush1.msra.mxu0 %v965
      %v967 = vand.u32 %v745, 4294901760
      %v968 = vsub.f32 %v745, %v967
      %969 = vmatprep.subr.mxu0 %v968
      %v970 = vand.u32 %v744, 4294901760
      %v971 = vsub.f32 %v744, %v970
      %972 = vmatpush1.msra.mxu0 %v971
      %v973 = vand.u32 %v747, 4294901760
      %v974 = vsub.f32 %v747, %v973
      %975 = vmatprep.subr.mxu0 %v974
      %v976 = vand.u32 %v746, 4294901760
      %v977 = vsub.f32 %v746, %v976
      %978 = vmatpush1.msra.mxu0 %v977
      %979 = vmatprep.subr.mxu0 0.0
      %980 = vmatpush1.msra.mxu0 0.0
      %981 = vmatprep.subr.mxu0 0.0
      %982 = vmatpush1.msra.mxu0 0.0
      %983 = vmatprep.subr.mxu0 0.0
      %984 = vmatpush1.msra.mxu0 0.0
      %985 = vmatprep.subr.mxu0 0.0
      %986 = vmatpush1.msra.mxu0 0.0
      %987 = vmatprep.subr.mxu0 0.0
      %988 = vmatpush1.msra.mxu0 0.0
      %989 = vmatprep.subr.mxu0 0.0
      %990 = vmatpush1.msra.mxu0 0.0
      %991 = vmatprep.subr.mxu0 0.0
      %992 = vmatpush1.msra.mxu0 0.0
      %993 = vmatprep.subr.mxu0 0.0
      %994 = vmatpush1.msra.mxu0 0.0
      %995 = vmatprep.subr.mxu0 0.0
      %996 = vmatpush1.msra.mxu0 0.0
      %997 = vmatprep.subr.mxu0 0.0
      %998 = vmatpush1.msra.mxu0 0.0
      %999 = vmatprep.subr.mxu0 0.0
      %1000 = vmatpush1.msra.mxu0 0.0
      %1001 = vmatprep.subr.mxu0 0.0
      %1002 = vmatpush1.msra.mxu0 0.0
      %1003 = vmatprep.subr.mxu0 0.0
      %1004 = vmatpush1.msra.mxu0 0.0
      %1005 = vmatprep.subr.mxu0 0.0
      %1006 = vmatpush1.msra.mxu0 0.0
      %1007 = vmatprep.subr.mxu0 0.0
      %1008 = vmatpush1.msra.mxu0 0.0
      %1009 = vmatprep.subr.mxu0 0.0
      %1010 = vmatpush1.msra.mxu0 0.0
      %1011 = vmatprep.subr.mxu0 0.0
      %1012 = vmatpush1.msra.mxu0 0.0
      %1013 = vmatprep.subr.mxu0 0.0
      %1014 = vmatpush1.msra.mxu0 0.0
      %1015 = vmatprep.subr.mxu0 0.0
      %1016 = vmatpush1.msra.mxu0 0.0
      %1017 = vmatprep.subr.mxu0 0.0
      %1018 = vmatpush1.msra.mxu0 0.0
      %1019 = vmatprep.subr.mxu0 0.0
      %1020 = vmatpush1.msra.mxu0 0.0
      %1021 = vmatprep.subr.mxu0 0.0
      %1022 = vmatpush1.msra.mxu0 0.0
      %1023 = vmatprep.subr.mxu0 0.0
      %1024 = vmatpush1.msra.mxu0 0.0
      %1025 = vmatprep.subr.mxu0 0.0
      %1026 = vmatpush1.msra.mxu0 0.0
      %1027 = vmatprep.subr.mxu0 0.0
      %1028 = vmatpush1.msra.mxu0 0.0
      %1029 = vmatprep.subr.mxu0 0.0
      %1030 = vmatpush1.msra.mxu0 0.0
      %1031 = vmatprep.subr.mxu0 0.0
      %1032 = vmatpush1.msra.mxu0 0.0
      %1033 = vmatprep.subr.mxu0 0.0
      %1034 = vmatpush1.msra.mxu0 0.0
      %1035 = vmatprep.mubr.f32.mxu0 0.0
      %v1036 = vand.u32 %v757, 4294901760
      %v1037 = vsub.f32 %v757, %v1036
      %1038 = vmatmul.mubr.f32.gmra.mrb[0].mxu0 %v1037
      %v1039 = vpop.f32.mrb[0].mxu0
      %v1040 = vadd.f32 %v951, %v1039
      %v1041 = vpop.f32.mrb[0].mxu0
      %v1042 = vadd.f32 %v953, %v1041
      %1043 = vdwg.mxu0
      %v1044 = vand.u32 %v741, 4294901760
      %1045 = vmatprep.subr.mxu0 %v1044
      %v1046 = vand.u32 %v740, 4294901760
      %1047 = vmatpush1.msra.mxu0 %v1046
      %v1048 = vand.u32 %v743, 4294901760
      %1049 = vmatprep.subr.mxu0 %v1048
      %v1050 = vand.u32 %v742, 4294901760
      %1051 = vmatpush1.msra.mxu0 %v1050
      %v1052 = vand.u32 %v745, 4294901760
      %1053 = vmatprep.subr.mxu0 %v1052
      %v1054 = vand.u32 %v744, 4294901760
      %1055 = vmatpush1.msra.mxu0 %v1054
      %v1056 = vand.u32 %v747, 4294901760
      %1057 = vmatprep.subr.mxu0 %v1056
      %v1058 = vand.u32 %v746, 4294901760
      %1059 = vmatpush1.msra.mxu0 %v1058
      %1060 = vmatprep.subr.mxu0 0.0
      %1061 = vmatpush1.msra.mxu0 0.0
      %1062 = vmatprep.subr.mxu0 0.0
      %1063 = vmatpush1.msra.mxu0 0.0
      %1064 = vmatprep.subr.mxu0 0.0
      %1065 = vmatpush1.msra.mxu0 0.0
      %1066 = vmatprep.subr.mxu0 0.0
      %1067 = vmatpush1.msra.mxu0 0.0
      %1068 = vmatprep.subr.mxu0 0.0
      %1069 = vmatpush1.msra.mxu0 0.0
      %1070 = vmatprep.subr.mxu0 0.0
      %1071 = vmatpush1.msra.mxu0 0.0
      %1072 = vmatprep.subr.mxu0 0.0
      %1073 = vmatpush1.msra.mxu0 0.0
      %1074 = vmatprep.subr.mxu0 0.0
      %1075 = vmatpush1.msra.mxu0 0.0
      %1076 = vmatprep.subr.mxu0 0.0
      %1077 = vmatpush1.msra.mxu0 0.0
      %1078 = vmatprep.subr.mxu0 0.0
      %1079 = vmatpush1.msra.mxu0 0.0
      %1080 = vmatprep.subr.mxu0 0.0
      %1081 = vmatpush1.msra.mxu0 0.0
      %1082 = vmatprep.subr.mxu0 0.0
      %1083 = vmatpush1.msra.mxu0 0.0
      %1084 = vmatprep.subr.mxu0 0.0
      %1085 = vmatpush1.msra.mxu0 0.0
      %1086 = vmatprep.subr.mxu0 0.0
      %1087 = vmatpush1.msra.mxu0 0.0
      %1088 = vmatprep.subr.mxu0 0.0
      %1089 = vmatpush1.msra.mxu0 0.0
      %1090 = vmatprep.subr.mxu0 0.0
      %1091 = vmatpush1.msra.mxu0 0.0
      %1092 = vmatprep.subr.mxu0 0.0
      %1093 = vmatpush1.msra.mxu0 0.0
      %1094 = vmatprep.subr.mxu0 0.0
      %1095 = vmatpush1.msra.mxu0 0.0
      %1096 = vmatprep.subr.mxu0 0.0
      %1097 = vmatpush1.msra.mxu0 0.0
      %1098 = vmatprep.subr.mxu0 0.0
      %1099 = vmatpush1.msra.mxu0 0.0
      %1100 = vmatprep.subr.mxu0 0.0
      %1101 = vmatpush1.msra.mxu0 0.0
      %1102 = vmatprep.subr.mxu0 0.0
      %1103 = vmatpush1.msra.mxu0 0.0
      %1104 = vmatprep.subr.mxu0 0.0
      %1105 = vmatpush1.msra.mxu0 0.0
      %1106 = vmatprep.subr.mxu0 0.0
      %1107 = vmatpush1.msra.mxu0 0.0
      %1108 = vmatprep.subr.mxu0 0.0
      %1109 = vmatpush1.msra.mxu0 0.0
      %1110 = vmatprep.subr.mxu0 0.0
      %1111 = vmatpush1.msra.mxu0 0.0
      %1112 = vmatprep.subr.mxu0 0.0
      %1113 = vmatpush1.msra.mxu0 0.0
      %1114 = vmatprep.subr.mxu0 0.0
      %1115 = vmatpush1.msra.mxu0 0.0
      %1116 = vmatprep.mubr.f32.mxu0 0.0
      %v1117 = vand.u32 %v757, 4294901760
      %v1118 = vsub.f32 %v757, %v1117
      %v1119 = vand.u32 %v1118, 4294901760
      %1120 = vmatmul.mubr.f32.gmra.mrb[0].mxu0 %v1119
      %v1121 = vpop.f32.mrb[0].mxu0
      %v1122 = vadd.f32 %v1040, %v1121
      %v1123 = vpop.f32.mrb[0].mxu0
      %v1124 = vadd.f32 %v1042, %v1123
      %1125 = vdwg.mxu0
      %v1126 = vand.u32 %v741, 4294901760
      %v1127 = vsub.f32 %v741, %v1126
      %v1128 = vand.u32 %v1127, 4294901760
      %1129 = vmatprep.subr.mxu0 %v1128
      %v1130 = vand.u32 %v740, 4294901760
      %v1131 = vsub.f32 %v740, %v1130
      %v1132 = vand.u32 %v1131, 4294901760
      %1133 = vmatpush1.msra.mxu0 %v1132
      %v1134 = vand.u32 %v743, 4294901760
      %v1135 = vsub.f32 %v743, %v1134
      %v1136 = vand.u32 %v1135, 4294901760
      %1137 = vmatprep.subr.mxu0 %v1136
      %v1138 = vand.u32 %v742, 4294901760
      %v1139 = vsub.f32 %v742, %v1138
      %v1140 = vand.u32 %v1139, 4294901760
      %1141 = vmatpush1.msra.mxu0 %v1140
      %v1142 = vand.u32 %v745, 4294901760
      %v1143 = vsub.f32 %v745, %v1142
      %v1144 = vand.u32 %v1143, 4294901760
      %1145 = vmatprep.subr.mxu0 %v1144
      %v1146 = vand.u32 %v744, 4294901760
      %v1147 = vsub.f32 %v744, %v1146
      %v1148 = vand.u32 %v1147, 4294901760
      %1149 = vmatpush1.msra.mxu0 %v1148
      %v1150 = vand.u32 %v747, 4294901760
      %v1151 = vsub.f32 %v747, %v1150
      %v1152 = vand.u32 %v1151, 4294901760
      %1153 = vmatprep.subr.mxu0 %v1152
      %v1154 = vand.u32 %v746, 4294901760
      %v1155 = vsub.f32 %v746, %v1154
      %v1156 = vand.u32 %v1155, 4294901760
      %1157 = vmatpush1.msra.mxu0 %v1156
      %1158 = vmatprep.subr.mxu0 0.0
      %1159 = vmatpush1.msra.mxu0 0.0
      %1160 = vmatprep.subr.mxu0 0.0
      %1161 = vmatpush1.msra.mxu0 0.0
      %1162 = vmatprep.subr.mxu0 0.0
      %1163 = vmatpush1.msra.mxu0 0.0
      %1164 = vmatprep.subr.mxu0 0.0
      %1165 = vmatpush1.msra.mxu0 0.0
      %1166 = vmatprep.subr.mxu0 0.0
      %1167 = vmatpush1.msra.mxu0 0.0
      %1168 = vmatprep.subr.mxu0 0.0
      %1169 = vmatpush1.msra.mxu0 0.0
      %1170 = vmatprep.subr.mxu0 0.0
      %1171 = vmatpush1.msra.mxu0 0.0
      %1172 = vmatprep.subr.mxu0 0.0
      %1173 = vmatpush1.msra.mxu0 0.0
      %1174 = vmatprep.subr.mxu0 0.0
      %1175 = vmatpush1.msra.mxu0 0.0
      %1176 = vmatprep.subr.mxu0 0.0
      %1177 = vmatpush1.msra.mxu0 0.0
      %1178 = vmatprep.subr.mxu0 0.0
      %1179 = vmatpush1.msra.mxu0 0.0
      %1180 = vmatprep.subr.mxu0 0.0
      %1181 = vmatpush1.msra.mxu0 0.0
      %1182 = vmatprep.subr.mxu0 0.0
      %1183 = vmatpush1.msra.mxu0 0.0
      %1184 = vmatprep.subr.mxu0 0.0
      %1185 = vmatpush1.msra.mxu0 0.0
      %1186 = vmatprep.subr.mxu0 0.0
      %1187 = vmatpush1.msra.mxu0 0.0
      %1188 = vmatprep.subr.mxu0 0.0
      %1189 = vmatpush1.msra.mxu0 0.0
      %1190 = vmatprep.subr.mxu0 0.0
      %1191 = vmatpush1.msra.mxu0 0.0
      %1192 = vmatprep.subr.mxu0 0.0
      %1193 = vmatpush1.msra.mxu0 0.0
      %1194 = vmatprep.subr.mxu0 0.0
      %1195 = vmatpush1.msra.mxu0 0.0
      %1196 = vmatprep.subr.mxu0 0.0
      %1197 = vmatpush1.msra.mxu0 0.0
      %1198 = vmatprep.subr.mxu0 0.0
      %1199 = vmatpush1.msra.mxu0 0.0
      %1200 = vmatprep.subr.mxu0 0.0
      %1201 = vmatpush1.msra.mxu0 0.0
      %1202 = vmatprep.subr.mxu0 0.0
      %1203 = vmatpush1.msra.mxu0 0.0
      %1204 = vmatprep.subr.mxu0 0.0
      %1205 = vmatpush1.msra.mxu0 0.0
      %1206 = vmatprep.subr.mxu0 0.0
      %1207 = vmatpush1.msra.mxu0 0.0
      %1208 = vmatprep.subr.mxu0 0.0
      %1209 = vmatpush1.msra.mxu0 0.0
      %1210 = vmatprep.subr.mxu0 0.0
      %1211 = vmatpush1.msra.mxu0 0.0
      %1212 = vmatprep.subr.mxu0 0.0
      %1213 = vmatpush1.msra.mxu0 0.0
      %1214 = vmatprep.mubr.f32.mxu0 0.0
      %v1215 = vand.u32 %v757, 4294901760
      %1216 = vmatmul.mubr.f32.gmra.mrb[0].mxu0 %v1215
      %v1217 = vpop.f32.mrb[0].mxu0
      %v1218 = vadd.f32 %v1122, %v1217
      %v1219 = vpop.f32.mrb[0].mxu0
      %v1220 = vadd.f32 %v1124, %v1219
      %1221 = vdwg.mxu0
      %v1222 = vand.u32 %v741, 4294901760
      %1223 = vmatprep.subr.mxu0 %v1222
      %v1224 = vand.u32 %v740, 4294901760
      %1225 = vmatpush1.msra.mxu0 %v1224
      %v1226 = vand.u32 %v743, 4294901760
      %1227 = vmatprep.subr.mxu0 %v1226
      %v1228 = vand.u32 %v742, 4294901760
      %1229 = vmatpush1.msra.mxu0 %v1228
      %v1230 = vand.u32 %v745, 4294901760
      %1231 = vmatprep.subr.mxu0 %v1230
      %v1232 = vand.u32 %v744, 4294901760
      %1233 = vmatpush1.msra.mxu0 %v1232
      %v1234 = vand.u32 %v747, 4294901760
      %1235 = vmatprep.subr.mxu0 %v1234
      %v1236 = vand.u32 %v746, 4294901760
      %1237 = vmatpush1.msra.mxu0 %v1236
      %1238 = vmatprep.subr.mxu0 0.0
      %1239 = vmatpush1.msra.mxu0 0.0
      %1240 = vmatprep.subr.mxu0 0.0
      %1241 = vmatpush1.msra.mxu0 0.0
      %1242 = vmatprep.subr.mxu0 0.0
      %1243 = vmatpush1.msra.mxu0 0.0
      %1244 = vmatprep.subr.mxu0 0.0
      %1245 = vmatpush1.msra.mxu0 0.0
      %1246 = vmatprep.subr.mxu0 0.0
      %1247 = vmatpush1.msra.mxu0 0.0
      %1248 = vmatprep.subr.mxu0 0.0
      %1249 = vmatpush1.msra.mxu0 0.0
      %1250 = vmatprep.subr.mxu0 0.0
      %1251 = vmatpush1.msra.mxu0 0.0
      %1252 = vmatprep.subr.mxu0 0.0
      %1253 = vmatpush1.msra.mxu0 0.0
      %1254 = vmatprep.subr.mxu0 0.0
      %1255 = vmatpush1.msra.mxu0 0.0
      %1256 = vmatprep.subr.mxu0 0.0
      %1257 = vmatpush1.msra.mxu0 0.0
      %1258 = vmatprep.subr.mxu0 0.0
      %1259 = vmatpush1.msra.mxu0 0.0
      %1260 = vmatprep.subr.mxu0 0.0
      %1261 = vmatpush1.msra.mxu0 0.0
      %1262 = vmatprep.subr.mxu0 0.0
      %1263 = vmatpush1.msra.mxu0 0.0
      %1264 = vmatprep.subr.mxu0 0.0
      %1265 = vmatpush1.msra.mxu0 0.0
      %1266 = vmatprep.subr.mxu0 0.0
      %1267 = vmatpush1.msra.mxu0 0.0
      %1268 = vmatprep.subr.mxu0 0.0
      %1269 = vmatpush1.msra.mxu0 0.0
      %1270 = vmatprep.subr.mxu0 0.0
      %1271 = vmatpush1.msra.mxu0 0.0
      %1272 = vmatprep.subr.mxu0 0.0
      %1273 = vmatpush1.msra.mxu0 0.0
      %1274 = vmatprep.subr.mxu0 0.0
      %1275 = vmatpush1.msra.mxu0 0.0
      %1276 = vmatprep.subr.mxu0 0.0
      %1277 = vmatpush1.msra.mxu0 0.0
      %1278 = vmatprep.subr.mxu0 0.0
      %1279 = vmatpush1.msra.mxu0 0.0
      %1280 = vmatprep.subr.mxu0 0.0
      %1281 = vmatpush1.msra.mxu0 0.0
      %1282 = vmatprep.subr.mxu0 0.0
      %1283 = vmatpush1.msra.mxu0 0.0
      %1284 = vmatprep.subr.mxu0 0.0
      %1285 = vmatpush1.msra.mxu0 0.0
      %1286 = vmatprep.subr.mxu0 0.0
      %1287 = vmatpush1.msra.mxu0 0.0
      %1288 = vmatprep.subr.mxu0 0.0
      %1289 = vmatpush1.msra.mxu0 0.0
      %1290 = vmatprep.subr.mxu0 0.0
      %1291 = vmatpush1.msra.mxu0 0.0
      %1292 = vmatprep.subr.mxu0 0.0
      %1293 = vmatpush1.msra.mxu0 0.0
      %1294 = vmatprep.mubr.f32.mxu0 0.0
      %v1295 = vand.u32 %v757, 4294901760
      %1296 = vmatmul.mubr.f32.gmra.mrb[0].mxu0 %v1295
      %v1297 = vpop.f32.mrb[0].mxu0
      %v1298 = vadd.f32 %v1218, %v1297
      %v1299 = vpop.f32.mrb[0].mxu0
      %v1300 = vadd.f32 %v1220, %v1299
      %1301 = vdwg.mxu0
      %v1304 = vcombine.low %v1298, %v1300
      %v1306 = vadd.f32 %v442, %v1304
      %1307 = vst [vmem:[%s429] sm:$0xff] %v1306
      %v1308 = vld [vmem:[%s419] sm:$0xff]
      %s1309 = scalar_lea.vmem %s3, 32
      %v1310 = vld [vmem:[%s1309] sm:$0xff]
      %v1311 = vld [vmem:[%s1309 + $0x8] sm:$0xff]
      %v1312 = vld [vmem:[%s1309 + $0x10] sm:$0xff]
      %v1313 = vld [vmem:[%s1309 + $0x18] sm:$0xff]
      %s1314 = scalar_lea.vmem %s4, 32
      %v1315 = vld [vmem:[%s1314] sm:$0xff]
      %v1316 = vld [vmem:[%s1314 + $0x8] sm:$0xff]
      %v1317 = vld [vmem:[%s1314 + $0x10] sm:$0xff]
      %v1318 = vld [vmem:[%s1314 + $0x18] sm:$0xff]
      %1320 = vset.pattern.permute.xlu0 0
      %1321 = vperm.xlu0 %1320, %v1310
      %v1322 = vpop.permute.xlu0 %1321
      %1325 = vset.pattern.permute.xlu0 0
      %1326 = vperm.xlu0 %1325, %v1311
      %v1327 = vpop.permute.xlu0 %1326
      %1330 = vset.pattern.permute.xlu0 0
      %1331 = vperm.xlu0 %1330, %v1312
      %v1332 = vpop.permute.xlu0 %1331
      %1335 = vset.pattern.permute.xlu0 0
      %1336 = vperm.xlu0 %1335, %v1313
      %v1337 = vpop.permute.xlu0 %1336
      %v1340 = vlaneseq
      %v1341 = vshrl.u32 %v1340, 7
      %v1342 = vsub.s32 0, %v1341
      %v1343 = vrot.slane %v1306, %v1342
      %v1344 = vlaneseq
      %v1345 = vshrl.u32 %v1344, 7
      %v1346 = vsub.s32 4, %v1345
      %v1347 = vrot.slane %v1306, %v1346
      %v1350 = vlaneseq
      %v1351 = vshrl.u32 %v1350, 7
      %v1352 = vsub.s32 0, %v1351
      %v1353 = vrot.slane %v1343, %v1352
      %v1354 = vlaneseq
      %v1355 = vshrl.u32 %v1354, 7
      %v1356 = vsub.s32 0, %v1355
      %v1357 = vrot.slane %v1347, %v1356
      %v1358 = vmul.f32 %v1322, %v1353
      %v1359 = vmul.f32 %v1322, %v1357
      %v1360 = vmul.f32 %v1327, %v1353
      %v1361 = vmul.f32 %v1327, %v1357
      %v1362 = vmul.f32 %v1332, %v1353
      %v1363 = vmul.f32 %v1332, %v1357
      %v1364 = vmul.f32 %v1337, %v1353
      %v1365 = vmul.f32 %v1337, %v1357
      %1367 = vset.pattern.permute.xlu0 0
      %1368 = vperm.xlu0 %1367, %v1315
      %v1369 = vpop.permute.xlu0 %1368
      %1372 = vset.pattern.permute.xlu0 0
      %1373 = vperm.xlu0 %1372, %v1316
      %v1374 = vpop.permute.xlu0 %1373
      %1377 = vset.pattern.permute.xlu0 0
      %1378 = vperm.xlu0 %1377, %v1317
      %v1379 = vpop.permute.xlu0 %1378
      %1382 = vset.pattern.permute.xlu0 0
      %1383 = vperm.xlu0 %1382, %v1318
      %v1384 = vpop.permute.xlu0 %1383
      %v1386 = vadd.f32 %v1369, %v1358
      %v1387 = vadd.f32 %v1369, %v1359
      %v1388 = vadd.f32 %v1374, %v1360
      %v1389 = vadd.f32 %v1374, %v1361
      %v1390 = vadd.f32 %v1379, %v1362
      %v1391 = vadd.f32 %v1379, %v1363
      %v1392 = vadd.f32 %v1384, %v1364
      %v1393 = vadd.f32 %v1384, %v1365
      %1394 = vset.pattern.permute.xlu0 1
      %1395 = vperm.xlu0 %1394, %v1310
      %v1396 = vpop.permute.xlu0 %1395
      %1398 = vset.pattern.permute.xlu0 1
      %1399 = vperm.xlu0 %1398, %v1311
      %v1400 = vpop.permute.xlu0 %1399
      %1402 = vset.pattern.permute.xlu0 1
      %1403 = vperm.xlu0 %1402, %v1312
      %v1404 = vpop.permute.xlu0 %1403
      %1406 = vset.pattern.permute.xlu0 1
      %1407 = vperm.xlu0 %1406, %v1313
      %v1408 = vpop.permute.xlu0 %1407
      %v1410 = vlaneseq
      %v1411 = vshrl.u32 %v1410, 7
      %v1412 = vsub.s32 1, %v1411
      %v1413 = vrot.slane %v1306, %v1412
      %v1414 = vlaneseq
      %v1415 = vshrl.u32 %v1414, 7
      %v1416 = vsub.s32 5, %v1415
      %v1417 = vrot.slane %v1306, %v1416
      %v1420 = vlaneseq
      %v1421 = vshrl.u32 %v1420, 7
      %v1422 = vsub.s32 1, %v1421
      %v1423 = vrot.slane %v1413, %v1422
      %v1424 = vlaneseq
      %v1425 = vshrl.u32 %v1424, 7
      %v1426 = vsub.s32 1, %v1425
      %v1427 = vrot.slane %v1417, %v1426
      %v1428 = vmul.f32 %v1396, %v1423
      %v1429 = vmul.f32 %v1396, %v1427
      %v1430 = vmul.f32 %v1400, %v1423
      %v1431 = vmul.f32 %v1400, %v1427
      %v1432 = vmul.f32 %v1404, %v1423
      %v1433 = vmul.f32 %v1404, %v1427
      %v1434 = vmul.f32 %v1408, %v1423
      %v1435 = vmul.f32 %v1408, %v1427
      %v1436 = vadd.f32 %v1386, %v1428
      %v1437 = vadd.f32 %v1387, %v1429
      %v1438 = vadd.f32 %v1388, %v1430
      %v1439 = vadd.f32 %v1389, %v1431
      %v1440 = vadd.f32 %v1390, %v1432
      %v1441 = vadd.f32 %v1391, %v1433
      %v1442 = vadd.f32 %v1392, %v1434
      %v1443 = vadd.f32 %v1393, %v1435
      %1444 = vset.pattern.permute.xlu0 2
      %1445 = vperm.xlu0 %1444, %v1310
      %v1446 = vpop.permute.xlu0 %1445
      %1448 = vset.pattern.permute.xlu0 2
      %1449 = vperm.xlu0 %1448, %v1311
      %v1450 = vpop.permute.xlu0 %1449
      %1452 = vset.pattern.permute.xlu0 2
      %1453 = vperm.xlu0 %1452, %v1312
      %v1454 = vpop.permute.xlu0 %1453
      %1456 = vset.pattern.permute.xlu0 2
      %1457 = vperm.xlu0 %1456, %v1313
      %v1458 = vpop.permute.xlu0 %1457
      %v1460 = vlaneseq
      %v1461 = vshrl.u32 %v1460, 7
      %v1462 = vsub.s32 2, %v1461
      %v1463 = vrot.slane %v1306, %v1462
      %v1464 = vlaneseq
      %v1465 = vshrl.u32 %v1464, 7
      %v1466 = vsub.s32 6, %v1465
      %v1467 = vrot.slane %v1306, %v1466
      %v1470 = vlaneseq
      %v1471 = vshrl.u32 %v1470, 7
      %v1472 = vsub.s32 2, %v1471
      %v1473 = vrot.slane %v1463, %v1472
      %v1474 = vlaneseq
      %v1475 = vshrl.u32 %v1474, 7
      %v1476 = vsub.s32 2, %v1475
      %v1477 = vrot.slane %v1467, %v1476
      %v1478 = vmul.f32 %v1446, %v1473
      %v1479 = vmul.f32 %v1446, %v1477
      %v1480 = vmul.f32 %v1450, %v1473
      %v1481 = vmul.f32 %v1450, %v1477
      %v1482 = vmul.f32 %v1454, %v1473
      %v1483 = vmul.f32 %v1454, %v1477
      %v1484 = vmul.f32 %v1458, %v1473
      %v1485 = vmul.f32 %v1458, %v1477
      %v1486 = vadd.f32 %v1436, %v1478
      %v1487 = vadd.f32 %v1437, %v1479
      %v1488 = vadd.f32 %v1438, %v1480
      %v1489 = vadd.f32 %v1439, %v1481
      %v1490 = vadd.f32 %v1440, %v1482
      %v1491 = vadd.f32 %v1441, %v1483
      %v1492 = vadd.f32 %v1442, %v1484
      %v1493 = vadd.f32 %v1443, %v1485
      %1494 = vset.pattern.permute.xlu0 3
      %1495 = vperm.xlu0 %1494, %v1310
      %v1496 = vpop.permute.xlu0 %1495
      %1498 = vset.pattern.permute.xlu0 3
      %1499 = vperm.xlu0 %1498, %v1311
      %v1500 = vpop.permute.xlu0 %1499
      %1502 = vset.pattern.permute.xlu0 3
      %1503 = vperm.xlu0 %1502, %v1312
      %v1504 = vpop.permute.xlu0 %1503
      %1506 = vset.pattern.permute.xlu0 3
      %1507 = vperm.xlu0 %1506, %v1313
      %v1508 = vpop.permute.xlu0 %1507
      %v1510 = vlaneseq
      %v1511 = vshrl.u32 %v1510, 7
      %v1512 = vsub.s32 3, %v1511
      %v1513 = vrot.slane %v1306, %v1512
      %v1514 = vlaneseq
      %v1515 = vshrl.u32 %v1514, 7
      %v1516 = vsub.s32 7, %v1515
      %v1517 = vrot.slane %v1306, %v1516
      %v1520 = vlaneseq
      %v1521 = vshrl.u32 %v1520, 7
      %v1522 = vsub.s32 3, %v1521
      %v1523 = vrot.slane %v1513, %v1522
      %v1524 = vlaneseq
      %v1525 = vshrl.u32 %v1524, 7
      %v1526 = vsub.s32 3, %v1525
      %v1527 = vrot.slane %v1517, %v1526
      %v1528 = vmul.f32 %v1496, %v1523
      %v1529 = vmul.f32 %v1496, %v1527
      %v1530 = vmul.f32 %v1500, %v1523
      %v1531 = vmul.f32 %v1500, %v1527
      %v1532 = vmul.f32 %v1504, %v1523
      %v1533 = vmul.f32 %v1504, %v1527
      %v1534 = vmul.f32 %v1508, %v1523
      %v1535 = vmul.f32 %v1508, %v1527
      %v1536 = vadd.f32 %v1486, %v1528
      %v1537 = vadd.f32 %v1487, %v1529
      %v1538 = vadd.f32 %v1488, %v1530
      %v1539 = vadd.f32 %v1489, %v1531
      %v1540 = vadd.f32 %v1490, %v1532
      %v1541 = vadd.f32 %v1491, %v1533
      %v1542 = vadd.f32 %v1492, %v1534
      %v1543 = vadd.f32 %v1493, %v1535
      %v1544 = vmul.f32 %v1536, %v1536
      %v1545 = vmul.f32 %v1537, %v1537
      %v1546 = vmul.f32 %v1538, %v1538
      %v1547 = vmul.f32 %v1539, %v1539
      %v1548 = vmul.f32 %v1540, %v1540
      %v1549 = vmul.f32 %v1541, %v1541
      %v1550 = vmul.f32 %v1542, %v1542
      %v1551 = vmul.f32 %v1543, %v1543
      %v1552 = vmul.f32 %v1536, %v1544
      %v1553 = vmul.f32 %v1537, %v1545
      %v1554 = vmul.f32 %v1538, %v1546
      %v1555 = vmul.f32 %v1539, %v1547
      %v1556 = vmul.f32 %v1540, %v1548
      %v1557 = vmul.f32 %v1541, %v1549
      %v1558 = vmul.f32 %v1542, %v1550
      %v1559 = vmul.f32 %v1543, %v1551
      %v1560 = vmul.f32 %v1552, 0.044715
      %v1561 = vmul.f32 %v1553, 0.044715
      %v1562 = vmul.f32 %v1554, 0.044715
      %v1563 = vmul.f32 %v1555, 0.044715
      %v1564 = vmul.f32 %v1556, 0.044715
      %v1565 = vmul.f32 %v1557, 0.044715
      %v1566 = vmul.f32 %v1558, 0.044715
      %v1567 = vmul.f32 %v1559, 0.044715
      %v1568 = vadd.f32 %v1536, %v1560
      %v1569 = vadd.f32 %v1537, %v1561
      %v1570 = vadd.f32 %v1538, %v1562
      %v1571 = vadd.f32 %v1539, %v1563
      %v1572 = vadd.f32 %v1540, %v1564
      %v1573 = vadd.f32 %v1541, %v1565
      %v1574 = vadd.f32 %v1542, %v1566
      %v1575 = vadd.f32 %v1543, %v1567
      %v1576 = vmul.f32 %v1568, 0.7978846
      %v1577 = vmul.f32 %v1569, 0.7978846
      %v1578 = vmul.f32 %v1570, 0.7978846
      %v1579 = vmul.f32 %v1571, 0.7978846
      %v1580 = vmul.f32 %v1572, 0.7978846
      %v1581 = vmul.f32 %v1573, 0.7978846
      %v1582 = vmul.f32 %v1574, 0.7978846
      %v1583 = vmul.f32 %v1575, 0.7978846
      %v1584 = vtanh.pop %v1576
      %v1585 = vtanh.pop %v1577
      %v1586 = vtanh.pop %v1578
      %v1587 = vtanh.pop %v1579
      %v1588 = vtanh.pop %v1580
      %v1589 = vtanh.pop %v1581
      %v1590 = vtanh.pop %v1582
      %v1591 = vtanh.pop %v1583
      %v1592 = vadd.f32 %v1584, 1.0
      %v1593 = vadd.f32 %v1585, 1.0
      %v1594 = vadd.f32 %v1586, 1.0
      %v1595 = vadd.f32 %v1587, 1.0
      %v1596 = vadd.f32 %v1588, 1.0
      %v1597 = vadd.f32 %v1589, 1.0
      %v1598 = vadd.f32 %v1590, 1.0
      %v1599 = vadd.f32 %v1591, 1.0
      %v1600 = vmul.f32 %v1592, 0.5
      %v1601 = vmul.f32 %v1593, 0.5
      %v1602 = vmul.f32 %v1594, 0.5
      %v1603 = vmul.f32 %v1595, 0.5
      %v1604 = vmul.f32 %v1596, 0.5
      %v1605 = vmul.f32 %v1597, 0.5
      %v1606 = vmul.f32 %v1598, 0.5
      %v1607 = vmul.f32 %v1599, 0.5
      %v1608 = vmul.f32 %v1536, %v1600
      %v1609 = vmul.f32 %v1537, %v1601
      %v1610 = vmul.f32 %v1538, %v1602
      %v1611 = vmul.f32 %v1539, %v1603
      %v1612 = vmul.f32 %v1540, %v1604
      %v1613 = vmul.f32 %v1541, %v1605
      %v1614 = vmul.f32 %v1542, %v1606
      %v1615 = vmul.f32 %v1543, %v1607
      %s1616 = scalar_lea.vmem %s5, 4
      %v1617 = vld [vmem:[%s1616] sm:$0xf]
      %s1618 = scalar_lea.vmem %s6, 4
      %v1619 = vld [vmem:[%s1618] sm:$0xf]
      %1621 = vset.pattern.permute.xlu0 0
      %1622 = vperm.xlu0 %1621, %v1619
      %v1623 = vpop.permute.xlu0 %1622
      %v1626 = vsel %vm755, %v1617, 0
      %v1628 = vand.u32 %v1609, 4294901760
      %1629 = vmatprep.subr.mxu0 %v1628
      %v1630 = vand.u32 %v1608, 4294901760
      %1631 = vmatpush1.msra.mxu0 %v1630
      %v1632 = vand.u32 %v1611, 4294901760
      %1633 = vmatprep.subr.mxu0 %v1632
      %v1634 = vand.u32 %v1610, 4294901760
      %1635 = vmatpush1.msra.mxu0 %v1634
      %v1636 = vand.u32 %v1613, 4294901760
      %1637 = vmatprep.subr.mxu0 %v1636
      %v1638 = vand.u32 %v1612, 4294901760
      %1639 = vmatpush1.msra.mxu0 %v1638
      %v1640 = vand.u32 %v1615, 4294901760
      %1641 = vmatprep.subr.mxu0 %v1640
      %v1642 = vand.u32 %v1614, 4294901760
      %1643 = vmatpush1.msra.mxu0 %v1642
      %1644 = vmatprep.subr.mxu0 0.0
      %1645 = vmatpush1.msra.mxu0 0.0
      %1646 = vmatprep.subr.mxu0 0.0
      %1647 = vmatpush1.msra.mxu0 0.0
      %1648 = vmatprep.subr.mxu0 0.0
      %1649 = vmatpush1.msra.mxu0 0.0
      %1650 = vmatprep.subr.mxu0 0.0
      %1651 = vmatpush1.msra.mxu0 0.0
      %1652 = vmatprep.subr.mxu0 0.0
      %1653 = vmatpush1.msra.mxu0 0.0
      %1654 = vmatprep.subr.mxu0 0.0
      %1655 = vmatpush1.msra.mxu0 0.0
      %1656 = vmatprep.subr.mxu0 0.0
      %1657 = vmatpush1.msra.mxu0 0.0
      %1658 = vmatprep.subr.mxu0 0.0
      %1659 = vmatpush1.msra.mxu0 0.0
      %1660 = vmatprep.subr.mxu0 0.0
      %1661 = vmatpush1.msra.mxu0 0.0
      %1662 = vmatprep.subr.mxu0 0.0
      %1663 = vmatpush1.msra.mxu0 0.0
      %1664 = vmatprep.subr.mxu0 0.0
      %1665 = vmatpush1.msra.mxu0 0.0
      %1666 = vmatprep.subr.mxu0 0.0
      %1667 = vmatpush1.msra.mxu0 0.0
      %1668 = vmatprep.subr.mxu0 0.0
      %1669 = vmatpush1.msra.mxu0 0.0
      %1670 = vmatprep.subr.mxu0 0.0
      %1671 = vmatpush1.msra.mxu0 0.0
      %1672 = vmatprep.subr.mxu0 0.0
      %1673 = vmatpush1.msra.mxu0 0.0
      %1674 = vmatprep.subr.mxu0 0.0
      %1675 = vmatpush1.msra.mxu0 0.0
      %1676 = vmatprep.subr.mxu0 0.0
      %1677 = vmatpush1.msra.mxu0 0.0
      %1678 = vmatprep.subr.mxu0 0.0
      %1679 = vmatpush1.msra.mxu0 0.0
      %1680 = vmatprep.subr.mxu0 0.0
      %1681 = vmatpush1.msra.mxu0 0.0
      %1682 = vmatprep.subr.mxu0 0.0
      %1683 = vmatpush1.msra.mxu0 0.0
      %1684 = vmatprep.subr.mxu0 0.0
      %1685 = vmatpush1.msra.mxu0 0.0
      %1686 = vmatprep.subr.mxu0 0.0
      %1687 = vmatpush1.msra.mxu0 0.0
      %1688 = vmatprep.subr.mxu0 0.0
      %1689 = vmatpush1.msra.mxu0 0.0
      %1690 = vmatprep.subr.mxu0 0.0
      %1691 = vmatpush1.msra.mxu0 0.0
      %1692 = vmatprep.subr.mxu0 0.0
      %1693 = vmatpush1.msra.mxu0 0.0
      %1694 = vmatprep.subr.mxu0 0.0
      %1695 = vmatpush1.msra.mxu0 0.0
      %1696 = vmatprep.subr.mxu0 0.0
      %1697 = vmatpush1.msra.mxu0 0.0
      %1698 = vmatprep.subr.mxu0 0.0
      %1699 = vmatpush1.msra.mxu0 0.0
      %1700 = vmatprep.mubr.f32.mxu0 0.0
      %v1701 = vand.u32 %v1626, 4294901760
      %v1702 = vsub.f32 %v1626, %v1701
      %v1703 = vand.u32 %v1702, 4294901760
      %v1704 = vsub.f32 %v1702, %v1703
      %v1705 = vand.u32 %v1704, 4294901760
      %1706 = vmatmul.mubr.f32.gmra.mrb[0].mxu0 %v1705
      %v1707 = vpop.f32.mrb[0].mxu0
      %v1708 = vadd.f32 %v1623, %v1707
      %v1709 = vpop.f32.mrb[0].mxu0
      %v1710 = vadd.f32 %v1623, %v1709
      %1711 = vdwg.mxu0
      %v1712 = vand.u32 %v1609, 4294901760
      %v1713 = vsub.f32 %v1609, %v1712
      %v1714 = vand.u32 %v1713, 4294901760
      %v1715 = vsub.f32 %v1713, %v1714
      %v1716 = vand.u32 %v1715, 4294901760
      %1717 = vmatprep.subr.mxu0 %v1716
      %v1718 = vand.u32 %v1608, 4294901760
      %v1719 = vsub.f32 %v1608, %v1718
      %v1720 = vand.u32 %v1719, 4294901760
      %v1721 = vsub.f32 %v1719, %v1720
      %v1722 = vand.u32 %v1721, 4294901760
      %1723 = vmatpush1.msra.mxu0 %v1722
      %v1724 = vand.u32 %v1611, 4294901760
      %v1725 = vsub.f32 %v1611, %v1724
      %v1726 = vand.u32 %v1725, 4294901760
      %v1727 = vsub.f32 %v1725, %v1726
      %v1728 = vand.u32 %v1727, 4294901760
      %1729 = vmatprep.subr.mxu0 %v1728
      %v1730 = vand.u32 %v1610, 4294901760
      %v1731 = vsub.f32 %v1610, %v1730
      %v1732 = vand.u32 %v1731, 4294901760
      %v1733 = vsub.f32 %v1731, %v1732
      %v1734 = vand.u32 %v1733, 4294901760
      %1735 = vmatpush1.msra.mxu0 %v1734
      %v1736 = vand.u32 %v1613, 4294901760
      %v1737 = vsub.f32 %v1613, %v1736
      %v1738 = vand.u32 %v1737, 4294901760
      %v1739 = vsub.f32 %v1737, %v1738
      %v1740 = vand.u32 %v1739, 4294901760
      %1741 = vmatprep.subr.mxu0 %v1740
      %v1742 = vand.u32 %v1612, 4294901760
      %v1743 = vsub.f32 %v1612, %v1742
      %v1744 = vand.u32 %v1743, 4294901760
      %v1745 = vsub.f32 %v1743, %v1744
      %v1746 = vand.u32 %v1745, 4294901760
      %1747 = vmatpush1.msra.mxu0 %v1746
      %v1748 = vand.u32 %v1615, 4294901760
      %v1749 = vsub.f32 %v1615, %v1748
      %v1750 = vand.u32 %v1749, 4294901760
      %v1751 = vsub.f32 %v1749, %v1750
      %v1752 = vand.u32 %v1751, 4294901760
      %1753 = vmatprep.subr.mxu0 %v1752
      %v1754 = vand.u32 %v1614, 4294901760
      %v1755 = vsub.f32 %v1614, %v1754
      %v1756 = vand.u32 %v1755, 4294901760
      %v1757 = vsub.f32 %v1755, %v1756
      %v1758 = vand.u32 %v1757, 4294901760
      %1759 = vmatpush1.msra.mxu0 %v1758
      %1760 = vmatprep.subr.mxu0 0.0
      %1761 = vmatpush1.msra.mxu0 0.0
      %1762 = vmatprep.subr.mxu0 0.0
      %1763 = vmatpush1.msra.mxu0 0.0
      %1764 = vmatprep.subr.mxu0 0.0
      %1765 = vmatpush1.msra.mxu0 0.0
      %1766 = vmatprep.subr.mxu0 0.0
      %1767 = vmatpush1.msra.mxu0 0.0
      %1768 = vmatprep.subr.mxu0 0.0
      %1769 = vmatpush1.msra.mxu0 0.0
      %1770 = vmatprep.subr.mxu0 0.0
      %1771 = vmatpush1.msra.mxu0 0.0
      %1772 = vmatprep.subr.mxu0 0.0
      %1773 = vmatpush1.msra.mxu0 0.0
      %1774 = vmatprep.subr.mxu0 0.0
      %1775 = vmatpush1.msra.mxu0 0.0
      %1776 = vmatprep.subr.mxu0 0.0
      %1777 = vmatpush1.msra.mxu0 0.0
      %1778 = vmatprep.subr.mxu0 0.0
      %1779 = vmatpush1.msra.mxu0 0.0
      %1780 = vmatprep.subr.mxu0 0.0
      %1781 = vmatpush1.msra.mxu0 0.0
      %1782 = vmatprep.subr.mxu0 0.0
      %1783 = vmatpush1.msra.mxu0 0.0
      %1784 = vmatprep.subr.mxu0 0.0
      %1785 = vmatpush1.msra.mxu0 0.0
      %1786 = vmatprep.subr.mxu0 0.0
      %1787 = vmatpush1.msra.mxu0 0.0
      %1788 = vmatprep.subr.mxu0 0.0
      %1789 = vmatpush1.msra.mxu0 0.0
      %1790 = vmatprep.subr.mxu0 0.0
      %1791 = vmatpush1.msra.mxu0 0.0
      %1792 = vmatprep.subr.mxu0 0.0
      %1793 = vmatpush1.msra.mxu0 0.0
      %1794 = vmatprep.subr.mxu0 0.0
      %1795 = vmatpush1.msra.mxu0 0.0
      %1796 = vmatprep.subr.mxu0 0.0
      %1797 = vmatpush1.msra.mxu0 0.0
      %1798 = vmatprep.subr.mxu0 0.0
      %1799 = vmatpush1.msra.mxu0 0.0
      %1800 = vmatprep.subr.mxu0 0.0
      %1801 = vmatpush1.msra.mxu0 0.0
      %1802 = vmatprep.subr.mxu0 0.0
      %1803 = vmatpush1.msra.mxu0 0.0
      %1804 = vmatprep.subr.mxu0 0.0
      %1805 = vmatpush1.msra.mxu0 0.0
      %1806 = vmatprep.subr.mxu0 0.0
      %1807 = vmatpush1.msra.mxu0 0.0
      %1808 = vmatprep.subr.mxu0 0.0
      %1809 = vmatpush1.msra.mxu0 0.0
      %1810 = vmatprep.subr.mxu0 0.0
      %1811 = vmatpush1.msra.mxu0 0.0
      %1812 = vmatprep.subr.mxu0 0.0
      %1813 = vmatpush1.msra.mxu0 0.0
      %1814 = vmatprep.subr.mxu0 0.0
      %1815 = vmatpush1.msra.mxu0 0.0
      %1816 = vmatprep.mubr.f32.mxu0 0.0
      %v1817 = vand.u32 %v1626, 4294901760
      %1818 = vmatmul.mubr.f32.gmra.mrb[0].mxu0 %v1817
      %v1819 = vpop.f32.mrb[0].mxu0
      %v1820 = vadd.f32 %v1708, %v1819
      %v1821 = vpop.f32.mrb[0].mxu0
      %v1822 = vadd.f32 %v1710, %v1821
      %1823 = vdwg.mxu0
      %v1824 = vand.u32 %v1609, 4294901760
      %v1825 = vsub.f32 %v1609, %v1824
      %1826 = vmatprep.subr.mxu0 %v1825
      %v1827 = vand.u32 %v1608, 4294901760
      %v1828 = vsub.f32 %v1608, %v1827
      %1829 = vmatpush1.msra.mxu0 %v1828
      %v1830 = vand.u32 %v1611, 4294901760
      %v1831 = vsub.f32 %v1611, %v1830
      %1832 = vmatprep.subr.mxu0 %v1831
      %v1833 = vand.u32 %v1610, 4294901760
      %v1834 = vsub.f32 %v1610, %v1833
      %1835 = vmatpush1.msra.mxu0 %v1834
      %v1836 = vand.u32 %v1613, 4294901760
      %v1837 = vsub.f32 %v1613, %v1836
      %1838 = vmatprep.subr.mxu0 %v1837
      %v1839 = vand.u32 %v1612, 4294901760
      %v1840 = vsub.f32 %v1612, %v1839
      %1841 = vmatpush1.msra.mxu0 %v1840
      %v1842 = vand.u32 %v1615, 4294901760
      %v1843 = vsub.f32 %v1615, %v1842
      %1844 = vmatprep.subr.mxu0 %v1843
      %v1845 = vand.u32 %v1614, 4294901760
      %v1846 = vsub.f32 %v1614, %v1845
      %1847 = vmatpush1.msra.mxu0 %v1846
      %1848 = vmatprep.subr.mxu0 0.0
      %1849 = vmatpush1.msra.mxu0 0.0
      %1850 = vmatprep.subr.mxu0 0.0
      %1851 = vmatpush1.msra.mxu0 0.0
      %1852 = vmatprep.subr.mxu0 0.0
      %1853 = vmatpush1.msra.mxu0 0.0
      %1854 = vmatprep.subr.mxu0 0.0
      %1855 = vmatpush1.msra.mxu0 0.0
      %1856 = vmatprep.subr.mxu0 0.0
      %1857 = vmatpush1.msra.mxu0 0.0
      %1858 = vmatprep.subr.mxu0 0.0
      %1859 = vmatpush1.msra.mxu0 0.0
      %1860 = vmatprep.subr.mxu0 0.0
      %1861 = vmatpush1.msra.mxu0 0.0
      %1862 = vmatprep.subr.mxu0 0.0
      %1863 = vmatpush1.msra.mxu0 0.0
      %1864 = vmatprep.subr.mxu0 0.0
      %1865 = vmatpush1.msra.mxu0 0.0
      %1866 = vmatprep.subr.mxu0 0.0
      %1867 = vmatpush1.msra.mxu0 0.0
      %1868 = vmatprep.subr.mxu0 0.0
      %1869 = vmatpush1.msra.mxu0 0.0
      %1870 = vmatprep.subr.mxu0 0.0
      %1871 = vmatpush1.msra.mxu0 0.0
      %1872 = vmatprep.subr.mxu0 0.0
      %1873 = vmatpush1.msra.mxu0 0.0
      %1874 = vmatprep.subr.mxu0 0.0
      %1875 = vmatpush1.msra.mxu0 0.0
      %1876 = vmatprep.subr.mxu0 0.0
      %1877 = vmatpush1.msra.mxu0 0.0
      %1878 = vmatprep.subr.mxu0 0.0
      %1879 = vmatpush1.msra.mxu0 0.0
      %1880 = vmatprep.subr.mxu0 0.0
      %1881 = vmatpush1.msra.mxu0 0.0
      %1882 = vmatprep.subr.mxu0 0.0
      %1883 = vmatpush1.msra.mxu0 0.0
      %1884 = vmatprep.subr.mxu0 0.0
      %1885 = vmatpush1.msra.mxu0 0.0
      %1886 = vmatprep.subr.mxu0 0.0
      %1887 = vmatpush1.msra.mxu0 0.0
      %1888 = vmatprep.subr.mxu0 0.0
      %1889 = vmatpush1.msra.mxu0 0.0
      %1890 = vmatprep.subr.mxu0 0.0
      %1891 = vmatpush1.msra.mxu0 0.0
      %1892 = vmatprep.subr.mxu0 0.0
      %1893 = vmatpush1.msra.mxu0 0.0
      %1894 = vmatprep.subr.mxu0 0.0
      %1895 = vmatpush1.msra.mxu0 0.0
      %1896 = vmatprep.subr.mxu0 0.0
      %1897 = vmatpush1.msra.mxu0 0.0
      %1898 = vmatprep.subr.mxu0 0.0
      %1899 = vmatpush1.msra.mxu0 0.0
      %1900 = vmatprep.subr.mxu0 0.0
      %1901 = vmatpush1.msra.mxu0 0.0
      %1902 = vmatprep.subr.mxu0 0.0
      %1903 = vmatpush1.msra.mxu0 0.0
      %1904 = vmatprep.mubr.f32.mxu0 0.0
      %v1905 = vand.u32 %v1626, 4294901760
      %v1906 = vsub.f32 %v1626, %v1905
      %1907 = vmatmul.mubr.f32.gmra.mrb[0].mxu0 %v1906
      %v1908 = vpop.f32.mrb[0].mxu0
      %v1909 = vadd.f32 %v1820, %v1908
      %v1910 = vpop.f32.mrb[0].mxu0
      %v1911 = vadd.f32 %v1822, %v1910
      %1912 = vdwg.mxu0
      %v1913 = vand.u32 %v1609, 4294901760
      %1914 = vmatprep.subr.mxu0 %v1913
      %v1915 = vand.u32 %v1608, 4294901760
      %1916 = vmatpush1.msra.mxu0 %v1915
      %v1917 = vand.u32 %v1611, 4294901760
      %1918 = vmatprep.subr.mxu0 %v1917
      %v1919 = vand.u32 %v1610, 4294901760
      %1920 = vmatpush1.msra.mxu0 %v1919
      %v1921 = vand.u32 %v1613, 4294901760
      %1922 = vmatprep.subr.mxu0 %v1921
      %v1923 = vand.u32 %v1612, 4294901760
      %1924 = vmatpush1.msra.mxu0 %v1923
      %v1925 = vand.u32 %v1615, 4294901760
      %1926 = vmatprep.subr.mxu0 %v1925
      %v1927 = vand.u32 %v1614, 4294901760
      %1928 = vmatpush1.msra.mxu0 %v1927
      %1929 = vmatprep.subr.mxu0 0.0
      %1930 = vmatpush1.msra.mxu0 0.0
      %1931 = vmatprep.subr.mxu0 0.0
      %1932 = vmatpush1.msra.mxu0 0.0
      %1933 = vmatprep.subr.mxu0 0.0
      %1934 = vmatpush1.msra.mxu0 0.0
      %1935 = vmatprep.subr.mxu0 0.0
      %1936 = vmatpush1.msra.mxu0 0.0
      %1937 = vmatprep.subr.mxu0 0.0
      %1938 = vmatpush1.msra.mxu0 0.0
      %1939 = vmatprep.subr.mxu0 0.0
      %1940 = vmatpush1.msra.mxu0 0.0
      %1941 = vmatprep.subr.mxu0 0.0
      %1942 = vmatpush1.msra.mxu0 0.0
      %1943 = vmatprep.subr.mxu0 0.0
      %1944 = vmatpush1.msra.mxu0 0.0
      %1945 = vmatprep.subr.mxu0 0.0
      %1946 = vmatpush1.msra.mxu0 0.0
      %1947 = vmatprep.subr.mxu0 0.0
      %1948 = vmatpush1.msra.mxu0 0.0
      %1949 = vmatprep.subr.mxu0 0.0
      %1950 = vmatpush1.msra.mxu0 0.0
      %1951 = vmatprep.subr.mxu0 0.0
      %1952 = vmatpush1.msra.mxu0 0.0
      %1953 = vmatprep.subr.mxu0 0.0
      %1954 = vmatpush1.msra.mxu0 0.0
      %1955 = vmatprep.subr.mxu0 0.0
      %1956 = vmatpush1.msra.mxu0 0.0
      %1957 = vmatprep.subr.mxu0 0.0
      %1958 = vmatpush1.msra.mxu0 0.0
      %1959 = vmatprep.subr.mxu0 0.0
      %1960 = vmatpush1.msra.mxu0 0.0
      %1961 = vmatprep.subr.mxu0 0.0
      %1962 = vmatpush1.msra.mxu0 0.0
      %1963 = vmatprep.subr.mxu0 0.0
      %1964 = vmatpush1.msra.mxu0 0.0
      %1965 = vmatprep.subr.mxu0 0.0
      %1966 = vmatpush1.msra.mxu0 0.0
      %1967 = vmatprep.subr.mxu0 0.0
      %1968 = vmatpush1.msra.mxu0 0.0
      %1969 = vmatprep.subr.mxu0 0.0
      %1970 = vmatpush1.msra.mxu0 0.0
      %1971 = vmatprep.subr.mxu0 0.0
      %1972 = vmatpush1.msra.mxu0 0.0
      %1973 = vmatprep.subr.mxu0 0.0
      %1974 = vmatpush1.msra.mxu0 0.0
      %1975 = vmatprep.subr.mxu0 0.0
      %1976 = vmatpush1.msra.mxu0 0.0
      %1977 = vmatprep.subr.mxu0 0.0
      %1978 = vmatpush1.msra.mxu0 0.0
      %1979 = vmatprep.subr.mxu0 0.0
      %1980 = vmatpush1.msra.mxu0 0.0
      %1981 = vmatprep.subr.mxu0 0.0
      %1982 = vmatpush1.msra.mxu0 0.0
      %1983 = vmatprep.subr.mxu0 0.0
      %1984 = vmatpush1.msra.mxu0 0.0
      %1985 = vmatprep.mubr.f32.mxu0 0.0
      %v1986 = vand.u32 %v1626, 4294901760
      %v1987 = vsub.f32 %v1626, %v1986
      %v1988 = vand.u32 %v1987, 4294901760
      %1989 = vmatmul.mubr.f32.gmra.mrb[0].mxu0 %v1988
      %v1990 = vpop.f32.mrb[0].mxu0
      %v1991 = vadd.f32 %v1909, %v1990
      %v1992 = vpop.f32.mrb[0].mxu0
      %v1993 = vadd.f32 %v1911, %v1992
      %1994 = vdwg.mxu0
      %v1995 = vand.u32 %v1609, 4294901760
      %v1996 = vsub.f32 %v1609, %v1995
      %v1997 = vand.u32 %v1996, 4294901760
      %1998 = vmatprep.subr.mxu0 %v1997
      %v1999 = vand.u32 %v1608, 4294901760
      %v2000 = vsub.f32 %v1608, %v1999
      %v2001 = vand.u32 %v2000, 4294901760
      %2002 = vmatpush1.msra.mxu0 %v2001
      %v2003 = vand.u32 %v1611, 4294901760
      %v2004 = vsub.f32 %v1611, %v2003
      %v2005 = vand.u32 %v2004, 4294901760
      %2006 = vmatprep.subr.mxu0 %v2005
      %v2007 = vand.u32 %v1610, 4294901760
      %v2008 = vsub.f32 %v1610, %v2007
      %v2009 = vand.u32 %v2008, 4294901760
      %2010 = vmatpush1.msra.mxu0 %v2009
      %v2011 = vand.u32 %v1613, 4294901760
      %v2012 = vsub.f32 %v1613, %v2011
      %v2013 = vand.u32 %v2012, 4294901760
      %2014 = vmatprep.subr.mxu0 %v2013
      %v2015 = vand.u32 %v1612, 4294901760
      %v2016 = vsub.f32 %v1612, %v2015
      %v2017 = vand.u32 %v2016, 4294901760
      %2018 = vmatpush1.msra.mxu0 %v2017
      %v2019 = vand.u32 %v1615, 4294901760
      %v2020 = vsub.f32 %v1615, %v2019
      %v2021 = vand.u32 %v2020, 4294901760
      %2022 = vmatprep.subr.mxu0 %v2021
      %v2023 = vand.u32 %v1614, 4294901760
      %v2024 = vsub.f32 %v1614, %v2023
      %v2025 = vand.u32 %v2024, 4294901760
      %2026 = vmatpush1.msra.mxu0 %v2025
      %2027 = vmatprep.subr.mxu0 0.0
      %2028 = vmatpush1.msra.mxu0 0.0
      %2029 = vmatprep.subr.mxu0 0.0
      %2030 = vmatpush1.msra.mxu0 0.0
      %2031 = vmatprep.subr.mxu0 0.0
      %2032 = vmatpush1.msra.mxu0 0.0
      %2033 = vmatprep.subr.mxu0 0.0
      %2034 = vmatpush1.msra.mxu0 0.0
      %2035 = vmatprep.subr.mxu0 0.0
      %2036 = vmatpush1.msra.mxu0 0.0
      %2037 = vmatprep.subr.mxu0 0.0
      %2038 = vmatpush1.msra.mxu0 0.0
      %2039 = vmatprep.subr.mxu0 0.0
      %2040 = vmatpush1.msra.mxu0 0.0
      %2041 = vmatprep.subr.mxu0 0.0
      %2042 = vmatpush1.msra.mxu0 0.0
      %2043 = vmatprep.subr.mxu0 0.0
      %2044 = vmatpush1.msra.mxu0 0.0
      %2045 = vmatprep.subr.mxu0 0.0
      %2046 = vmatpush1.msra.mxu0 0.0
      %2047 = vmatprep.subr.mxu0 0.0
      %2048 = vmatpush1.msra.mxu0 0.0
      %2049 = vmatprep.subr.mxu0 0.0
      %2050 = vmatpush1.msra.mxu0 0.0
      %2051 = vmatprep.subr.mxu0 0.0
      %2052 = vmatpush1.msra.mxu0 0.0
      %2053 = vmatprep.subr.mxu0 0.0
      %2054 = vmatpush1.msra.mxu0 0.0
      %2055 = vmatprep.subr.mxu0 0.0
      %2056 = vmatpush1.msra.mxu0 0.0
      %2057 = vmatprep.subr.mxu0 0.0
      %2058 = vmatpush1.msra.mxu0 0.0
      %2059 = vmatprep.subr.mxu0 0.0
      %2060 = vmatpush1.msra.mxu0 0.0
      %2061 = vmatprep.subr.mxu0 0.0
      %2062 = vmatpush1.msra.mxu0 0.0
      %2063 = vmatprep.subr.mxu0 0.0
      %2064 = vmatpush1.msra.mxu0 0.0
      %2065 = vmatprep.subr.mxu0 0.0
      %2066 = vmatpush1.msra.mxu0 0.0
      %2067 = vmatprep.subr.mxu0 0.0
      %2068 = vmatpush1.msra.mxu0 0.0
      %2069 = vmatprep.subr.mxu0 0.0
      %2070 = vmatpush1.msra.mxu0 0.0
      %2071 = vmatprep.subr.mxu0 0.0
      %2072 = vmatpush1.msra.mxu0 0.0
      %2073 = vmatprep.subr.mxu0 0.0
      %2074 = vmatpush1.msra.mxu0 0.0
      %2075 = vmatprep.subr.mxu0 0.0
      %2076 = vmatpush1.msra.mxu0 0.0
      %2077 = vmatprep.subr.mxu0 0.0
      %2078 = vmatpush1.msra.mxu0 0.0
      %2079 = vmatprep.subr.mxu0 0.0
      %2080 = vmatpush1.msra.mxu0 0.0
      %2081 = vmatprep.subr.mxu0 0.0
      %2082 = vmatpush1.msra.mxu0 0.0
      %2083 = vmatprep.mubr.f32.mxu0 0.0
      %v2084 = vand.u32 %v1626, 4294901760
      %2085 = vmatmul.mubr.f32.gmra.mrb[0].mxu0 %v2084
      %v2086 = vpop.f32.mrb[0].mxu0
      %v2087 = vadd.f32 %v1991, %v2086
      %v2088 = vpop.f32.mrb[0].mxu0
      %v2089 = vadd.f32 %v1993, %v2088
      %2090 = vdwg.mxu0
      %v2091 = vand.u32 %v1609, 4294901760
      %2092 = vmatprep.subr.mxu0 %v2091
      %v2093 = vand.u32 %v1608, 4294901760
      %2094 = vmatpush1.msra.mxu0 %v2093
      %v2095 = vand.u32 %v1611, 4294901760
      %2096 = vmatprep.subr.mxu0 %v2095
      %v2097 = vand.u32 %v1610, 4294901760
      %2098 = vmatpush1.msra.mxu0 %v2097
      %v2099 = vand.u32 %v1613, 4294901760
      %2100 = vmatprep.subr.mxu0 %v2099
      %v2101 = vand.u32 %v1612, 4294901760
      %2102 = vmatpush1.msra.mxu0 %v2101
      %v2103 = vand.u32 %v1615, 4294901760
      %2104 = vmatprep.subr.mxu0 %v2103
      %v2105 = vand.u32 %v1614, 4294901760
      %2106 = vmatpush1.msra.mxu0 %v2105
      %2107 = vmatprep.subr.mxu0 0.0
      %2108 = vmatpush1.msra.mxu0 0.0
      %2109 = vmatprep.subr.mxu0 0.0
      %2110 = vmatpush1.msra.mxu0 0.0
      %2111 = vmatprep.subr.mxu0 0.0
      %2112 = vmatpush1.msra.mxu0 0.0
      %2113 = vmatprep.subr.mxu0 0.0
      %2114 = vmatpush1.msra.mxu0 0.0
      %2115 = vmatprep.subr.mxu0 0.0
      %2116 = vmatpush1.msra.mxu0 0.0
      %2117 = vmatprep.subr.mxu0 0.0
      %2118 = vmatpush1.msra.mxu0 0.0
      %2119 = vmatprep.subr.mxu0 0.0
      %2120 = vmatpush1.msra.mxu0 0.0
      %2121 = vmatprep.subr.mxu0 0.0
      %2122 = vmatpush1.msra.mxu0 0.0
      %2123 = vmatprep.subr.mxu0 0.0
      %2124 = vmatpush1.msra.mxu0 0.0
      %2125 = vmatprep.subr.mxu0 0.0
      %2126 = vmatpush1.msra.mxu0 0.0
      %2127 = vmatprep.subr.mxu0 0.0
      %2128 = vmatpush1.msra.mxu0 0.0
      %2129 = vmatprep.subr.mxu0 0.0
      %2130 = vmatpush1.msra.mxu0 0.0
      %2131 = vmatprep.subr.mxu0 0.0
      %2132 = vmatpush1.msra.mxu0 0.0
      %2133 = vmatprep.subr.mxu0 0.0
      %2134 = vmatpush1.msra.mxu0 0.0
      %2135 = vmatprep.subr.mxu0 0.0
      %2136 = vmatpush1.msra.mxu0 0.0
      %2137 = vmatprep.subr.mxu0 0.0
      %2138 = vmatpush1.msra.mxu0 0.0
      %2139 = vmatprep.subr.mxu0 0.0
      %2140 = vmatpush1.msra.mxu0 0.0
      %2141 = vmatprep.subr.mxu0 0.0
      %2142 = vmatpush1.msra.mxu0 0.0
      %2143 = vmatprep.subr.mxu0 0.0
      %2144 = vmatpush1.msra.mxu0 0.0
      %2145 = vmatprep.subr.mxu0 0.0
      %2146 = vmatpush1.msra.mxu0 0.0
      %2147 = vmatprep.subr.mxu0 0.0
      %2148 = vmatpush1.msra.mxu0 0.0
      %2149 = vmatprep.subr.mxu0 0.0
      %2150 = vmatpush1.msra.mxu0 0.0
      %2151 = vmatprep.subr.mxu0 0.0
      %2152 = vmatpush1.msra.mxu0 0.0
      %2153 = vmatprep.subr.mxu0 0.0
      %2154 = vmatpush1.msra.mxu0 0.0
      %2155 = vmatprep.subr.mxu0 0.0
      %2156 = vmatpush1.msra.mxu0 0.0
      %2157 = vmatprep.subr.mxu0 0.0
      %2158 = vmatpush1.msra.mxu0 0.0
      %2159 = vmatprep.subr.mxu0 0.0
      %2160 = vmatpush1.msra.mxu0 0.0
      %2161 = vmatprep.subr.mxu0 0.0
      %2162 = vmatpush1.msra.mxu0 0.0
      %2163 = vmatprep.mubr.f32.mxu0 0.0
      %v2164 = vand.u32 %v1626, 4294901760
      %2165 = vmatmul.mubr.f32.gmra.mrb[0].mxu0 %v2164
      %v2166 = vpop.f32.mrb[0].mxu0
      %v2167 = vadd.f32 %v2087, %v2166
      %v2168 = vpop.f32.mrb[0].mxu0
      %v2169 = vadd.f32 %v2089, %v2168
      %2170 = vdwg.mxu0
      %v2173 = vcombine.low %v2167, %v2169
      %v2175 = vadd.f32 %v1308, %v2173
      %2176 = vst [vmem:[%s439] sm:$0xff] %v2175
      %s2177 = smul.u32 2, %s25
      %p2178 = scmp.lt.s32.totalorder %s24, 1
      %s2179 = scalar_select %p2178, %s24, 1
      %p2180 = scmp.lt.s32.totalorder %s2177, 1
      %s2181 = scalar_select %p2180, %s2177, 1
      %s2182 = smul.addr %s2179, 2
      %s2183 = sadd.s32 %s2181, %s2182
      %s2184 = smul.addr %s2183, 4
      %s2185 = scalar_lea.vmem %s7, %s2184
      %s2186 = smul.u32 2, %s25
      %p2187 = scmp.lt.s32.totalorder %s24, 1
      %s2188 = scalar_select %p2187, %s24, 1
      %p2189 = scmp.lt.s32.totalorder %s2186, 1
      %s2190 = scalar_select %p2189, %s2186, 1
      %s2191 = smul.addr %s2188, 2
      %s2192 = sadd.s32 %s2190, %s2191
      %s2193 = smul.addr %s2192, 4
      %s2194 = scalar_lea.vmem %s8, %s2193
      // Predicated region
      $region49: #{_fold_forward_multi.1} parent=47 // pred_check
        %p2195 = pneg %p220
      $region50: #{_fold_forward_multi.1} parent=47 // pred_check_branch
        %2197 = sbr.rel (%p2195) target = $region52
      $region51: #{_fold_forward_multi.1} parent=47 // pred_region
        %s2198 = smul.u32 2, %s25
      $region52: #{_fold_forward_multi.1} parent=47 // pred_fallthru
        _
      // Predicated region
      $region53: #{_fold_forward_multi.1} parent=47 // pred_check
        %p2199 = pneg %p248
      $region54: #{_fold_forward_multi.1} parent=47 // pred_check_branch
        %2201 = sbr.rel (%p2199) target = $region56
      $region55: #{_fold_forward_multi.1} parent=47 // pred_region
        %s2202 = smul.u32 2, %s25
      $region56: #{_fold_forward_multi.1} parent=47 // pred_fallthru
        _
    $region48: #{_fold_forward_multi.1} parent=5 // pred_fallthru
      _
    %p2203 = scmp.le.s32.totalorder 2, %s15
    // Predicated region
    $region57: #{_fold_forward_multi.1} parent=5 // pred_check
      %p2204 = pneg %p2203
    $region58: #{_fold_forward_multi.1} parent=5 // pred_check_branch
      %2206 = sbr.rel (%p2204) target = $region60
    $region59: #{_fold_forward_multi.1} parent=5 // pred_region
      %s2207 = ssub.s32 %s15, 2
      // Predicated region
      $region61: #{_fold_forward_multi.1} parent=59 // pred_check
        %p2208 = pneg %p226
      $region62: #{_fold_forward_multi.1} parent=59 // pred_check_branch
        %2210 = sbr.rel (%p2208) target = $region64
      $region63: #{_fold_forward_multi.1} parent=59 // pred_region
        %s2211 = smul.u32 2, %s27
        %p2212 = scmp.lt.s32.totalorder %s26, 1
        %s2213 = scalar_select %p2212, %s26, 1
        %p2214 = scmp.lt.s32.totalorder %s2211, 1
        %s2215 = scalar_select %p2214, %s2211, 1
        %s2216 = smul.addr %s2213, 2
        %s2217 = sadd.s32 %s2215, %s2216
        %s2218 = smul.addr %s2217, 4
        %s2219 = scalar_lea.vmem %s7, %s2218
      $region64: #{_fold_forward_multi.1} parent=59 // pred_fallthru
        _
      // Predicated region
      $region65: #{_fold_forward_multi.1} parent=59 // pred_check
        %p2220 = pneg %p254
      $region66: #{_fold_forward_multi.1} parent=59 // pred_check_branch
        %2222 = sbr.rel (%p2220) target = $region68
      $region67: #{_fold_forward_multi.1} parent=59 // pred_region
        %s2223 = smul.u32 2, %s27
        %p2224 = scmp.lt.s32.totalorder %s26, 1
        %s2225 = scalar_select %p2224, %s26, 1
        %p2226 = scmp.lt.s32.totalorder %s2223, 1
        %s2227 = scalar_select %p2226, %s2223, 1
        %s2228 = smul.addr %s2225, 2
        %s2229 = sadd.s32 %s2227, %s2228
        %s2230 = smul.addr %s2229, 4
        %s2231 = scalar_lea.vmem %s8, %s2230
      $region68: #{_fold_forward_multi.1} parent=59 // pred_fallthru
        _
    $region60: #{_fold_forward_multi.1} parent=5 // pred_fallthru
      _
  $region6: #{_fold_forward_multi.1} parent=0 // loop_footer
    %s19 = sadd.s32 1, %s15
  $region7: #{_fold_forward_multi.1} parent=0 // loop_footer_branch
    %14 = sbr.rel target = $region3
  $region8: #{_fold_forward_multi.1} parent=0 // loop_exit
    _

</llo_original>
